<compile_context>
chip_gen: v7x
topology: tpu7x:2x2x1
jax: 0.10.0
libtpu: 0.0.40
codegen_flags: <defaults>
</compile_context>

<pallas_src>
import functools

import jax
import jax.numpy as jnp
from jax import lax
from jax.experimental import pallas as pl
from jax.experimental.pallas import tpu as pltpu


def _leaky(x, alpha=0.2):
    # LeakyReLU(0.2)
    return jnp.where(x >= 0, x, alpha * x)


def _matT(a, w):
    # (M, K) x (O, K) -> (M, O)   (== a @ w.T, contraction on last dims, f32 accum)
    return lax.dot_general(a, w, (((1,), (1,)), ((), ())),
                           preferred_element_type=jnp.float32)


def _gcn_kernel(inp_ref, out1s_ref, cc_ref, pooled_ref,
                adjn_ref, adjt_ref, wsw_ref, bsw_ref, wcm2_ref,
                wdw_ref, bdw_ref,
                out2_ref, loss_ref, *, bt, cout_chunk):
    n = adjn_ref.shape[0]          # num_nodes == num_classes
    cout = wdw_ref.shape[0]

    adjn = adjn_ref[...]           # (N, N)  = static_adj / n
    adjt = adjt_ref[...]           # (N, N)  = static_adj^T * 0.5 / n
    wsw = wsw_ref[...]             # (Cin, Cin)
    bsw = bsw_ref[...]             # (1, Cin)
    wcm2 = wcm2_ref[...]           # (N, Cin)   (x-part of conv_create_co_mat)
    bdw = bdw_ref[...]             # (1, Cout)

    inp = inp_ref[...]             # (Bt, N, Cin)  label embeddings (node-major)
    out1s = out1s_ref[...]         # (Bt, N)       sigmoid(fc(pooled))
    pooled = pooled_ref[...]       # (Bt, F)       pooled feature / Cout
    cc = cc_ref[...]               # (Bt, N, 1)    w_cm1 @ connect_vec + b_cm

    d_scale = (0.5 / n) ** 0.5     # folds the *0.5 blend and /n propagation scaling

    out2_rows = []
    loss_rows = []
    for bi in range(bt):           # unrolled; Bt is small (<= 8)
        x0 = inp[bi]                               # (N, Cin)
        o1 = out1s[bi:bi + 1, :]                   # (1, N)
        p = pooled[bi:bi + 1, :]                   # (1, F)
        ccb = cc[bi]                               # (N, 1)

        # ---- forward_static_gcn (residual) ----
        h = _leaky(jnp.dot(adjn, x0, preferred_element_type=jnp.float32))   # (N, Cin)
        x = x0 + _leaky(_matT(h, wsw) + bsw)                                 # (N, Cin)

        # ---- forward_construct_dynamic_graph ----
        raw = _matT(wcm2, x) + ccb                                           # (N, N)
        a = jax.nn.sigmoid(raw)
        # genAdj: D^{-1/2} A^T D^{-1/2}; we build m = dynamic_adj^T, scaled by 0.5/n.
        d = lax.rsqrt(jnp.sum(a, axis=1, keepdims=True)) * d_scale           # (N, 1)
        mn = _matT(d, d) * a + adjt                                          # (N, N)

        # ---- dynamic_adj regularization loss ----
        transformed = _matT(o1, mn)                                          # (1, N)
        diff = o1 - transformed
        loss_rows.append(jnp.sqrt(jnp.sum(diff * diff, axis=1, keepdims=True)))  # (1, 1)

        # ---- forward_dynamic_gcn + out2 head (chunked over Cout) ----
        g = _leaky(jnp.dot(mn, x, preferred_element_type=jnp.float32))      # (N, Cin)
        acc = None
        for c0 in range(0, cout, cout_chunk):
            w_c = wdw_ref[pl.ds(c0, cout_chunk), :]                          # (CK, Cin)
            z_c = _leaky(_matT(g, w_c) + bdw[:, c0:c0 + cout_chunk])         # (N, CK)
            part = _matT(p[:, c0:c0 + cout_chunk], z_c)                      # (1, N)
            acc = part if acc is None else acc + part
        out2_rows.append(acc)

    out2_ref[...] = jnp.concatenate(out2_rows, axis=0)                       # (Bt, N)
    loss_ref[...] = jnp.concatenate(loss_rows, axis=0)                       # (Bt, 1)


def aaai_fixed_connect_prob_residual_gcn(feat_map, inp, params, *, batch_tile=None):
    B, F, H, W = feat_map.shape
    N, Cin = params["w_cm2"].shape
    Cout = params["w_dw"].shape[0]
    assert inp.shape == (B, N, Cin)
    assert Cout == F, "out_features must equal backbone feat_dim for the out2 matmul"

    f32 = jnp.float32
    feat = feat_map.reshape(B, F, H * W).astype(f32)

    # ---- heads hoisted out of the kernel (lane-dense batched XLA matmuls) ----
    pooled = jnp.mean(feat, axis=2)                                      # (B, F)  avgpool
    out1 = pooled @ params["w_fc"].T + params["b_fc"][None, :]           # (B, N)  fc
    connect = pooled @ params["w_cn"].T + params["b_cn"][None, :]        # (B, Cin) connect
    out1_sig = jax.nn.sigmoid(out1)                                      # (B, N)
    cc = connect @ params["w_cm1"].T + params["b_cm"][None, :]           # (B, N)
    cc_col = cc[:, :, None].astype(f32)                                  # (B, N, 1)
    pooled_s = (pooled * (1.0 / Cout)).astype(f32)                       # fold /out_features

    adj = params["adj"].astype(f32)
    adjn = adj * (1.0 / N)                                               # fold /num_nodes
    adjt_s = adj.T * (0.5 / N)                                           # fold *0.5, /n
    bsw = params["b_sw"].reshape(1, Cin).astype(f32)
    bdw = params["b_dw"].reshape(1, Cout).astype(f32)

    # Batch tile: full batch if small, else a multiple-of-8 tile (keeps blocks aligned).
    if batch_tile is None:
        bt = B if B <= 8 else (8 if B % 8 == 0 else B)
    else:
        bt = batch_tile
    assert B % bt == 0

    cout_chunk = 512 if (Cout > 512 and Cout % 512 == 0) else Cout

    kernel = functools.partial(_gcn_kernel, bt=bt, cout_chunk=cout_chunk)

    def full2(shape):
        return pl.BlockSpec(shape, lambda b: (0, 0))

    in_specs = [
        pl.BlockSpec((bt, N, Cin), lambda b: (b, 0, 0)),   # inp (label embeddings)
        pl.BlockSpec((bt, N), lambda b: (b, 0)),           # sigmoid(out1)
        pl.BlockSpec((bt, N, 1), lambda b: (b, 0, 0)),     # cc column
        pl.BlockSpec((bt, F), lambda b: (b, 0)),           # pooled / Cout
        full2((N, N)), full2((N, N)),                      # adj/n, adj^T*0.5/n
        full2((Cin, Cin)), full2((1, Cin)),                # static_weight conv1d
        full2((N, Cin)),                                   # conv_create_co_mat (x part)
        full2((Cout, Cin)), full2((1, Cout)),              # dynamic_weight conv1d
    ]
    out_specs = (
        pl.BlockSpec((bt, N), lambda b: (b, 0)),           # out2 (lane-dense rows)
        pl.BlockSpec((bt, 1), lambda b: (b, 0)),           # per-sample loss
    )
    out_shape = (
        jax.ShapeDtypeStruct((B, N), f32),
        jax.ShapeDtypeStruct((B, 1), f32),
    )

    out2, loss_b = pl.pallas_call(
        kernel,
        grid=(B // bt,),
        in_specs=in_specs,
        out_specs=out_specs,
        out_shape=out_shape,
        compiler_params=pltpu.CompilerParams(dimension_semantics=("parallel",)),
    )(inp.astype(f32), out1_sig.astype(f32), cc_col, pooled_s,
      adjn, adjt_s,
      params["w_sw"].astype(f32), bsw, params["w_cm2"].astype(f32),
      params["w_dw"].astype(f32), bdw)

    return out1, out2, jnp.sum(loss_b)


if __name__ == "__main__":
    key = jax.random.PRNGKey(0)
    # Small stand-ins for (feat_dim=2048, in_features=300, out_features=2048, 80 classes)
    B, F, H, W = 2, 32, 4, 4
    num_classes = 8
    in_features = 16
    out_features = F  # out_features must equal feat_dim (2048 == 2048 in the original)

    ks = jax.random.split(key, 16)
    feat_map = jax.random.normal(ks[0], (B, F, H, W), jnp.float32)   # backbone output
    inp = jax.random.normal(ks[1], (B, num_classes, in_features), jnp.float32)

    adj_raw = jax.random.uniform(ks[2], (num_classes, num_classes), jnp.float32)
    params = dict(
        adj=adj_raw.T,  # CustomMatrix(adjList, needTranspose=True)
        w_fc=jax.random.normal(ks[3], (num_classes, F)) * 0.1,
        b_fc=jax.random.normal(ks[4], (num_classes,)) * 0.01,
        w_cn=jax.random.normal(ks[5], (in_features, F)) * 0.1,
        b_cn=jax.random.normal(ks[6], (in_features,)) * 0.01,
        w_sw=jax.random.normal(ks[7], (in_features, in_features)) * 0.1,
        b_sw=jax.random.normal(ks[8], (in_features,)) * 0.01,
        w_cm1=jax.random.normal(ks[9], (num_classes, in_features)) * 0.1,
        w_cm2=jax.random.normal(ks[10], (num_classes, in_features)) * 0.1,
        b_cm=jax.random.normal(ks[11], (num_classes,)) * 0.01,
        w_dw=jax.random.normal(ks[12], (out_features, in_features)) * 0.1,
        b_dw=jax.random.normal(ks[13], (out_features,)) * 0.01,
    )
    params = {k: v.astype(jnp.float32) for k, v in params.items()}

    out1, out2, loss = aaai_fixed_connect_prob_residual_gcn(feat_map, inp, params)
    jax.block_until_ready((out1, out2, loss))
    assert out1.shape == (B, num_classes)
    assert out2.shape == (B, num_classes)
    assert loss.shape == ()
    print("KERNEL_OK")
</pallas_src>

<mosaic_0001>
module attributes {stable_mosaic.version = 11 : i64} {
  func.func @_gcn_kernel(%arg0: i32, %arg1: memref<2x8x16xf32, #tpu.memory_space<vmem>>, %arg2: memref<2x8xf32, #tpu.memory_space<vmem>>, %arg3: memref<2x8x1xf32, #tpu.memory_space<vmem>>, %arg4: memref<2x32xf32, #tpu.memory_space<vmem>>, %arg5: memref<8x8xf32, #tpu.memory_space<vmem>>, %arg6: memref<8x8xf32, #tpu.memory_space<vmem>>, %arg7: memref<16x16xf32, #tpu.memory_space<vmem>>, %arg8: memref<1x16xf32, #tpu.memory_space<vmem>>, %arg9: memref<8x16xf32, #tpu.memory_space<vmem>>, %arg10: memref<32x16xf32, #tpu.memory_space<vmem>>, %arg11: memref<1x32xf32, #tpu.memory_space<vmem>>, %arg12: memref<2x8xf32, #tpu.memory_space<vmem>>, %arg13: memref<2x1xf32, #tpu.memory_space<vmem>>) attributes {dimension_semantics = [#tpu.dimension_semantics<parallel>], iteration_bounds = array<i64: 1>, scalar_prefetch = 0 : i64, scratch_operands = 0 : i64, tpu.core_type = #tpu.core_type<tc>, window_params = [{transform_indices = @transform_0, window_bounds = array<i64: 2, 8, 16>}, {transform_indices = @transform_1, window_bounds = array<i64: 2, 8>}, {transform_indices = @transform_2, window_bounds = array<i64: 2, 8, 1>}, {transform_indices = @transform_3, window_bounds = array<i64: 2, 32>}, {pipeline_mode = #tpu.pipeline_mode<synchronous>, transform_indices = @transform_4, window_bounds = array<i64: 8, 8>}, {pipeline_mode = #tpu.pipeline_mode<synchronous>, transform_indices = @transform_5, window_bounds = array<i64: 8, 8>}, {pipeline_mode = #tpu.pipeline_mode<synchronous>, transform_indices = @transform_6, window_bounds = array<i64: 16, 16>}, {pipeline_mode = #tpu.pipeline_mode<synchronous>, transform_indices = @transform_7, window_bounds = array<i64: 1, 16>}, {pipeline_mode = #tpu.pipeline_mode<synchronous>, transform_indices = @transform_8, window_bounds = array<i64: 8, 16>}, {pipeline_mode = #tpu.pipeline_mode<synchronous>, transform_indices = @transform_9, window_bounds = array<i64: 32, 16>}, {pipeline_mode = #tpu.pipeline_mode<synchronous>, transform_indices = @transform_10, window_bounds = array<i64: 1, 32>}, {transform_indices = @transform_11, window_bounds = array<i64: 2, 8>}, {transform_indices = @transform_12, window_bounds = array<i64: 2, 1>}]} {
    %c0 = arith.constant 0 : index
    %c0_0 = arith.constant 0 : index
    %0 = vector.load %arg5[%c0, %c0_0] : memref<8x8xf32, #tpu.memory_space<vmem>>, vector<8x8xf32>
    %c0_1 = arith.constant 0 : index
    %c0_2 = arith.constant 0 : index
    %1 = vector.load %arg6[%c0_1, %c0_2] : memref<8x8xf32, #tpu.memory_space<vmem>>, vector<8x8xf32>
    %c0_3 = arith.constant 0 : index
    %c0_4 = arith.constant 0 : index
    %2 = vector.load %arg7[%c0_3, %c0_4] : memref<16x16xf32, #tpu.memory_space<vmem>>, vector<16x16xf32>
    %c0_5 = arith.constant 0 : index
    %c0_6 = arith.constant 0 : index
    %3 = vector.load %arg8[%c0_5, %c0_6] : memref<1x16xf32, #tpu.memory_space<vmem>>, vector<1x16xf32>
    %c0_7 = arith.constant 0 : index
    %c0_8 = arith.constant 0 : index
    %4 = vector.load %arg9[%c0_7, %c0_8] : memref<8x16xf32, #tpu.memory_space<vmem>>, vector<8x16xf32>
    %c0_9 = arith.constant 0 : index
    %c0_10 = arith.constant 0 : index
    %5 = vector.load %arg11[%c0_9, %c0_10] : memref<1x32xf32, #tpu.memory_space<vmem>>, vector<1x32xf32>
    %c0_11 = arith.constant 0 : index
    %c0_12 = arith.constant 0 : index
    %c0_13 = arith.constant 0 : index
    %6 = vector.load %arg1[%c0_11, %c0_12, %c0_13] : memref<2x8x16xf32, #tpu.memory_space<vmem>>, vector<2x8x16xf32>
    %c0_14 = arith.constant 0 : index
    %c0_15 = arith.constant 0 : index
    %7 = vector.load %arg2[%c0_14, %c0_15] : memref<2x8xf32, #tpu.memory_space<vmem>>, vector<2x8xf32>
    %c0_16 = arith.constant 0 : index
    %c0_17 = arith.constant 0 : index
    %8 = vector.load %arg4[%c0_16, %c0_17] : memref<2x32xf32, #tpu.memory_space<vmem>>, vector<2x32xf32>
    %c0_18 = arith.constant 0 : index
    %c0_19 = arith.constant 0 : index
    %c0_20 = arith.constant 0 : index
    %9 = vector.load %arg3[%c0_18, %c0_19, %c0_20] : memref<2x8x1xf32, #tpu.memory_space<vmem>>, vector<2x8x1xf32>
    %10 = vector.extract_strided_slice %6 {offsets = [0, 0, 0], sizes = [1, 8, 16], strides = [1, 1, 1]} : vector<2x8x16xf32> to vector<1x8x16xf32>
    %11 = vector.shape_cast %10 : vector<1x8x16xf32> to vector<8x16xf32>
    %12 = vector.extract_strided_slice %7 {offsets = [0, 0], sizes = [1, 8], strides = [1, 1]} : vector<2x8xf32> to vector<1x8xf32>
    %13 = vector.extract_strided_slice %8 {offsets = [0, 0], sizes = [1, 32], strides = [1, 1]} : vector<2x32xf32> to vector<1x32xf32>
    %14 = vector.extract_strided_slice %9 {offsets = [0, 0, 0], sizes = [1, 8, 1], strides = [1, 1, 1]} : vector<2x8x1xf32> to vector<1x8x1xf32>
    %15 = vector.shape_cast %14 : vector<1x8x1xf32> to vector<8x1xf32>
    %cst = arith.constant dense<0.000000e+00> : vector<8x16xf32>
    %16 = tpu.matmul %0, %11, %cst {dimension_numbers = #tpu.dot_dimension_numbers<[1], [0], [0], [1], [0, 0, 1, 1], [], []>} : vector<8x8xf32>, vector<8x16xf32>, vector<8x16xf32> -> vector<8x16xf32>
    %cst_21 = arith.constant 0.000000e+00 : f32
    %17 = vector.broadcast %cst_21 : f32 to vector<8x16xf32>
    %18 = arith.cmpf oge, %16, %17 : vector<8x16xf32>
    %cst_22 = arith.constant 2.000000e-01 : f32
    %19 = vector.broadcast %cst_22 : f32 to vector<8x16xf32>
    %20 = arith.mulf %19, %16 : vector<8x16xf32>
    %21 = arith.select %18, %16, %20 : vector<8x16xi1>, vector<8x16xf32>
    %cst_23 = arith.constant dense<0.000000e+00> : vector<8x16xf32>
    %22 = tpu.matmul %21, %2, %cst_23 {dimension_numbers = #tpu.dot_dimension_numbers<[1], [1], [0], [0], [0, 0, 1, 0], [], []>} : vector<8x16xf32>, vector<16x16xf32>, vector<8x16xf32> -> vector<8x16xf32>
    %23 = vector.broadcast %3 : vector<1x16xf32> to vector<8x16xf32>
    %24 = arith.addf %22, %23 : vector<8x16xf32>
    %cst_24 = arith.constant 0.000000e+00 : f32
    %25 = vector.broadcast %cst_24 : f32 to vector<8x16xf32>
    %26 = arith.cmpf oge, %24, %25 : vector<8x16xf32>
    %cst_25 = arith.constant 2.000000e-01 : f32
    %27 = vector.broadcast %cst_25 : f32 to vector<8x16xf32>
    %28 = arith.mulf %27, %24 : vector<8x16xf32>
    %29 = arith.select %26, %24, %28 : vector<8x16xi1>, vector<8x16xf32>
    %30 = arith.addf %11, %29 : vector<8x16xf32>
    %cst_26 = arith.constant dense<0.000000e+00> : vector<8x8xf32>
    %31 = tpu.matmul %4, %30, %cst_26 {dimension_numbers = #tpu.dot_dimension_numbers<[1], [1], [0], [0], [0, 0, 1, 0], [], []>} : vector<8x16xf32>, vector<8x16xf32>, vector<8x8xf32> -> vector<8x8xf32>
    %32 = vector.broadcast %15 : vector<8x1xf32> to vector<8x8xf32>
    %33 = arith.addf %31, %32 : vector<8x8xf32>
    %34 = arith.negf %33 : vector<8x8xf32>
    %35 = math.exp %34 : vector<8x8xf32>
    %cst_27 = arith.constant 1.000000e+00 : f32
    %36 = vector.broadcast %cst_27 : f32 to vector<8x8xf32>
    %37 = arith.addf %36, %35 : vector<8x8xf32>
    %38 = arith.divf %36, %37 : vector<8x8xf32>
    %cst_28 = arith.constant dense<0.000000e+00> : vector<8xf32>
    %39 = vector.multi_reduction <add>, %38, %cst_28 [1] : vector<8x8xf32> to vector<8xf32>
    %40 = vector.shape_cast %39 : vector<8xf32> to vector<8x1xf32>
    %41 = math.rsqrt %40 : vector<8x1xf32>
    %cst_29 = arith.constant 2.500000e-01 : f32
    %42 = vector.broadcast %cst_29 : f32 to vector<8x1xf32>
    %43 = arith.mulf %41, %42 : vector<8x1xf32>
    %cst_30 = arith.constant dense<0.000000e+00> : vector<8x8xf32>
    %44 = tpu.matmul %43, %43, %cst_30 {dimension_numbers = #tpu.dot_dimension_numbers<[1], [1], [0], [0], [0, 0, 1, 0], [], []>} : vector<8x1xf32>, vector<8x1xf32>, vector<8x8xf32> -> vector<8x8xf32>
    %45 = arith.mulf %44, %38 : vector<8x8xf32>
    %46 = arith.addf %45, %1 : vector<8x8xf32>
    %cst_31 = arith.constant dense<0.000000e+00> : vector<1x8xf32>
    %47 = tpu.matmul %12, %46, %cst_31 {dimension_numbers = #tpu.dot_dimension_numbers<[1], [1], [0], [0], [0, 0, 1, 0], [], []>} : vector<1x8xf32>, vector<8x8xf32>, vector<1x8xf32> -> vector<1x8xf32>
    %48 = arith.subf %12, %47 : vector<1x8xf32>
    %49 = arith.mulf %48, %48 : vector<1x8xf32>
    %cst_32 = arith.constant dense<0.000000e+00> : vector<1xf32>
    %50 = vector.multi_reduction <add>, %49, %cst_32 [1] : vector<1x8xf32> to vector<1xf32>
    %51 = vector.shape_cast %50 : vector<1xf32> to vector<1x1xf32>
    %52 = math.sqrt %51 : vector<1x1xf32>
    %cst_33 = arith.constant dense<0.000000e+00> : vector<8x16xf32>
    %53 = tpu.matmul %46, %30, %cst_33 {dimension_numbers = #tpu.dot_dimension_numbers<[1], [0], [0], [1], [0, 0, 1, 1], [], []>} : vector<8x8xf32>, vector<8x16xf32>, vector<8x16xf32> -> vector<8x16xf32>
    %cst_34 = arith.constant 0.000000e+00 : f32
    %54 = vector.broadcast %cst_34 : f32 to vector<8x16xf32>
    %55 = arith.cmpf oge, %53, %54 : vector<8x16xf32>
    %cst_35 = arith.constant 2.000000e-01 : f32
    %56 = vector.broadcast %cst_35 : f32 to vector<8x16xf32>
    %57 = arith.mulf %56, %53 : vector<8x16xf32>
    %58 = arith.select %55, %53, %57 : vector<8x16xi1>, vector<8x16xf32>
    %c0_36 = arith.constant 0 : index
    %c0_37 = arith.constant 0 : index
    %59 = vector.load %arg10[%c0_36, %c0_37] : memref<32x16xf32, #tpu.memory_space<vmem>>, vector<32x16xf32>
    %cst_38 = arith.constant dense<0.000000e+00> : vector<8x32xf32>
    %60 = tpu.matmul %58, %59, %cst_38 {dimension_numbers = #tpu.dot_dimension_numbers<[1], [1], [0], [0], [0, 0, 1, 0], [], []>} : vector<8x16xf32>, vector<32x16xf32>, vector<8x32xf32> -> vector<8x32xf32>
    %61 = vector.broadcast %5 : vector<1x32xf32> to vector<8x32xf32>
    %62 = arith.addf %60, %61 : vector<8x32xf32>
    %cst_39 = arith.constant 0.000000e+00 : f32
    %63 = vector.broadcast %cst_39 : f32 to vector<8x32xf32>
    %64 = arith.cmpf oge, %62, %63 : vector<8x32xf32>
    %cst_40 = arith.constant 2.000000e-01 : f32
    %65 = vector.broadcast %cst_40 : f32 to vector<8x32xf32>
    %66 = arith.mulf %65, %62 : vector<8x32xf32>
    %67 = arith.select %64, %62, %66 : vector<8x32xi1>, vector<8x32xf32>
    %cst_41 = arith.constant dense<0.000000e+00> : vector<1x8xf32>
    %68 = tpu.matmul %13, %67, %cst_41 {dimension_numbers = #tpu.dot_dimension_numbers<[1], [1], [0], [0], [0, 0, 1, 0], [], []>} : vector<1x32xf32>, vector<8x32xf32>, vector<1x8xf32> -> vector<1x8xf32>
    %69 = vector.extract_strided_slice %6 {offsets = [1, 0, 0], sizes = [1, 8, 16], strides = [1, 1, 1]} : vector<2x8x16xf32> to vector<1x8x16xf32>
    %70 = vector.shape_cast %69 : vector<1x8x16xf32> to vector<8x16xf32>
    %71 = vector.extract_strided_slice %7 {offsets = [1, 0], sizes = [1, 8], strides = [1, 1]} : vector<2x8xf32> to vector<1x8xf32>
    %72 = vector.extract_strided_slice %8 {offsets = [1, 0], sizes = [1, 32], strides = [1, 1]} : vector<2x32xf32> to vector<1x32xf32>
    %73 = vector.extract_strided_slice %9 {offsets = [1, 0, 0], sizes = [1, 8, 1], strides = [1, 1, 1]} : vector<2x8x1xf32> to vector<1x8x1xf32>
    %74 = vector.shape_cast %73 : vector<1x8x1xf32> to vector<8x1xf32>
    %cst_42 = arith.constant dense<0.000000e+00> : vector<8x16xf32>
    %75 = tpu.matmul %0, %70, %cst_42 {dimension_numbers = #tpu.dot_dimension_numbers<[1], [0], [0], [1], [0, 0, 1, 1], [], []>} : vector<8x8xf32>, vector<8x16xf32>, vector<8x16xf32> -> vector<8x16xf32>
    %cst_43 = arith.constant 0.000000e+00 : f32
    %76 = vector.broadcast %cst_43 : f32 to vector<8x16xf32>
    %77 = arith.cmpf oge, %75, %76 : vector<8x16xf32>
    %cst_44 = arith.constant 2.000000e-01 : f32
    %78 = vector.broadcast %cst_44 : f32 to vector<8x16xf32>
    %79 = arith.mulf %78, %75 : vector<8x16xf32>
    %80 = arith.select %77, %75, %79 : vector<8x16xi1>, vector<8x16xf32>
    %cst_45 = arith.constant dense<0.000000e+00> : vector<8x16xf32>
    %81 = tpu.matmul %80, %2, %cst_45 {dimension_numbers = #tpu.dot_dimension_numbers<[1], [1], [0], [0], [0, 0, 1, 0], [], []>} : vector<8x16xf32>, vector<16x16xf32>, vector<8x16xf32> -> vector<8x16xf32>
    %82 = vector.broadcast %3 : vector<1x16xf32> to vector<8x16xf32>
    %83 = arith.addf %81, %82 : vector<8x16xf32>
    %cst_46 = arith.constant 0.000000e+00 : f32
    %84 = vector.broadcast %cst_46 : f32 to vector<8x16xf32>
    %85 = arith.cmpf oge, %83, %84 : vector<8x16xf32>
    %cst_47 = arith.constant 2.000000e-01 : f32
    %86 = vector.broadcast %cst_47 : f32 to vector<8x16xf32>
    %87 = arith.mulf %86, %83 : vector<8x16xf32>
    %88 = arith.select %85, %83, %87 : vector<8x16xi1>, vector<8x16xf32>
    %89 = arith.addf %70, %88 : vector<8x16xf32>
    %cst_48 = arith.constant dense<0.000000e+00> : vector<8x8xf32>
    %90 = tpu.matmul %4, %89, %cst_48 {dimension_numbers = #tpu.dot_dimension_numbers<[1], [1], [0], [0], [0, 0, 1, 0], [], []>} : vector<8x16xf32>, vector<8x16xf32>, vector<8x8xf32> -> vector<8x8xf32>
    %91 = vector.broadcast %74 : vector<8x1xf32> to vector<8x8xf32>
    %92 = arith.addf %90, %91 : vector<8x8xf32>
    %93 = arith.negf %92 : vector<8x8xf32>
    %94 = math.exp %93 : vector<8x8xf32>
    %cst_49 = arith.constant 1.000000e+00 : f32
    %95 = vector.broadcast %cst_49 : f32 to vector<8x8xf32>
    %96 = arith.addf %95, %94 : vector<8x8xf32>
    %97 = arith.divf %95, %96 : vector<8x8xf32>
    %cst_50 = arith.constant dense<0.000000e+00> : vector<8xf32>
    %98 = vector.multi_reduction <add>, %97, %cst_50 [1] : vector<8x8xf32> to vector<8xf32>
    %99 = vector.shape_cast %98 : vector<8xf32> to vector<8x1xf32>
    %100 = math.rsqrt %99 : vector<8x1xf32>
    %cst_51 = arith.constant 2.500000e-01 : f32
    %101 = vector.broadcast %cst_51 : f32 to vector<8x1xf32>
    %102 = arith.mulf %100, %101 : vector<8x1xf32>
    %cst_52 = arith.constant dense<0.000000e+00> : vector<8x8xf32>
    %103 = tpu.matmul %102, %102, %cst_52 {dimension_numbers = #tpu.dot_dimension_numbers<[1], [1], [0], [0], [0, 0, 1, 0], [], []>} : vector<8x1xf32>, vector<8x1xf32>, vector<8x8xf32> -> vector<8x8xf32>
    %104 = arith.mulf %103, %97 : vector<8x8xf32>
    %105 = arith.addf %104, %1 : vector<8x8xf32>
    %cst_53 = arith.constant dense<0.000000e+00> : vector<1x8xf32>
    %106 = tpu.matmul %71, %105, %cst_53 {dimension_numbers = #tpu.dot_dimension_numbers<[1], [1], [0], [0], [0, 0, 1, 0], [], []>} : vector<1x8xf32>, vector<8x8xf32>, vector<1x8xf32> -> vector<1x8xf32>
    %107 = arith.subf %71, %106 : vector<1x8xf32>
    %108 = arith.mulf %107, %107 : vector<1x8xf32>
    %cst_54 = arith.constant dense<0.000000e+00> : vector<1xf32>
    %109 = vector.multi_reduction <add>, %108, %cst_54 [1] : vector<1x8xf32> to vector<1xf32>
    %110 = vector.shape_cast %109 : vector<1xf32> to vector<1x1xf32>
    %111 = math.sqrt %110 : vector<1x1xf32>
    %cst_55 = arith.constant dense<0.000000e+00> : vector<8x16xf32>
    %112 = tpu.matmul %105, %89, %cst_55 {dimension_numbers = #tpu.dot_dimension_numbers<[1], [0], [0], [1], [0, 0, 1, 1], [], []>} : vector<8x8xf32>, vector<8x16xf32>, vector<8x16xf32> -> vector<8x16xf32>
    %cst_56 = arith.constant 0.000000e+00 : f32
    %113 = vector.broadcast %cst_56 : f32 to vector<8x16xf32>
    %114 = arith.cmpf oge, %112, %113 : vector<8x16xf32>
    %cst_57 = arith.constant 2.000000e-01 : f32
    %115 = vector.broadcast %cst_57 : f32 to vector<8x16xf32>
    %116 = arith.mulf %115, %112 : vector<8x16xf32>
    %117 = arith.select %114, %112, %116 : vector<8x16xi1>, vector<8x16xf32>
    %c0_58 = arith.constant 0 : index
    %c0_59 = arith.constant 0 : index
    %118 = vector.load %arg10[%c0_58, %c0_59] : memref<32x16xf32, #tpu.memory_space<vmem>>, vector<32x16xf32>
    %cst_60 = arith.constant dense<0.000000e+00> : vector<8x32xf32>
    %119 = tpu.matmul %117, %118, %cst_60 {dimension_numbers = #tpu.dot_dimension_numbers<[1], [1], [0], [0], [0, 0, 1, 0], [], []>} : vector<8x16xf32>, vector<32x16xf32>, vector<8x32xf32> -> vector<8x32xf32>
    %120 = vector.broadcast %5 : vector<1x32xf32> to vector<8x32xf32>
    %121 = arith.addf %119, %120 : vector<8x32xf32>
    %cst_61 = arith.constant 0.000000e+00 : f32
    %122 = vector.broadcast %cst_61 : f32 to vector<8x32xf32>
    %123 = arith.cmpf oge, %121, %122 : vector<8x32xf32>
    %cst_62 = arith.constant 2.000000e-01 : f32
    %124 = vector.broadcast %cst_62 : f32 to vector<8x32xf32>
    %125 = arith.mulf %124, %121 : vector<8x32xf32>
    %126 = arith.select %123, %121, %125 : vector<8x32xi1>, vector<8x32xf32>
    %cst_63 = arith.constant dense<0.000000e+00> : vector<1x8xf32>
    %127 = tpu.matmul %72, %126, %cst_63 {dimension_numbers = #tpu.dot_dimension_numbers<[1], [1], [0], [0], [0, 0, 1, 0], [], []>} : vector<1x32xf32>, vector<8x32xf32>, vector<1x8xf32> -> vector<1x8xf32>
    %128 = tpu.concatenate %68, %127 in 0 : vector<1x8xf32>, vector<1x8xf32> -> vector<2x8xf32>
    %c0_64 = arith.constant 0 : index
    %c0_65 = arith.constant 0 : index
    %129 = vector.load %arg12[%c0_64, %c0_65] : memref<2x8xf32, #tpu.memory_space<vmem>>, vector<2x8xf32>
    tpu.vector_store %arg12[%c0_64, %c0_65], %128 {strides = array<i32>} : memref<2x8xf32, #tpu.memory_space<vmem>>, vector<2x8xf32>,
    %130 = tpu.concatenate %52, %111 in 0 : vector<1x1xf32>, vector<1x1xf32> -> vector<2x1xf32>
    %c0_66 = arith.constant 0 : index
    %c0_67 = arith.constant 0 : index
    %131 = vector.load %arg13[%c0_66, %c0_67] : memref<2x1xf32, #tpu.memory_space<vmem>>, vector<2x1xf32>
    tpu.vector_store %arg13[%c0_66, %c0_67], %130 {strides = array<i32>} : memref<2x1xf32, #tpu.memory_space<vmem>>, vector<2x1xf32>,
    return
  }
  func.func @transform_0(%arg0: i32) -> (i32, i32, i32) {
    %c0_i32 = arith.constant 0 : i32
    %c0_i32_0 = arith.constant 0 : i32
    %c0_i32_1 = arith.constant 0 : i32
    return %arg0, %c0_i32, %c0_i32_0 : i32, i32, i32
  }
  func.func @transform_1(%arg0: i32) -> (i32, i32) {
    %c0_i32 = arith.constant 0 : i32
    %c0_i32_0 = arith.constant 0 : i32
    return %arg0, %c0_i32 : i32, i32
  }
  func.func @transform_2(%arg0: i32) -> (i32, i32, i32) {
    %c0_i32 = arith.constant 0 : i32
    %c0_i32_0 = arith.constant 0 : i32
    %c0_i32_1 = arith.constant 0 : i32
    return %arg0, %c0_i32, %c0_i32_0 : i32, i32, i32
  }
  func.func @transform_3(%arg0: i32) -> (i32, i32) {
    %c0_i32 = arith.constant 0 : i32
    %c0_i32_0 = arith.constant 0 : i32
    return %arg0, %c0_i32 : i32, i32
  }
  func.func @transform_4(%arg0: i32) -> (i32, i32) {
    %c0_i32 = arith.constant 0 : i32
    %c0_i32_0 = arith.constant 0 : i32
    %c0_i32_1 = arith.constant 0 : i32
    return %c0_i32, %c0_i32_0 : i32, i32
  }
  func.func @transform_5(%arg0: i32) -> (i32, i32) {
    %c0_i32 = arith.constant 0 : i32
    %c0_i32_0 = arith.constant 0 : i32
    %c0_i32_1 = arith.constant 0 : i32
    return %c0_i32, %c0_i32_0 : i32, i32
  }
  func.func @transform_6(%arg0: i32) -> (i32, i32) {
    %c0_i32 = arith.constant 0 : i32
    %c0_i32_0 = arith.constant 0 : i32
    %c0_i32_1 = arith.constant 0 : i32
    return %c0_i32, %c0_i32_0 : i32, i32
  }
  func.func @transform_7(%arg0: i32) -> (i32, i32) {
    %c0_i32 = arith.constant 0 : i32
    %c0_i32_0 = arith.constant 0 : i32
    %c0_i32_1 = arith.constant 0 : i32
    return %c0_i32, %c0_i32_0 : i32, i32
  }
  func.func @transform_8(%arg0: i32) -> (i32, i32) {
    %c0_i32 = arith.constant 0 : i32
    %c0_i32_0 = arith.constant 0 : i32
    %c0_i32_1 = arith.constant 0 : i32
    return %c0_i32, %c0_i32_0 : i32, i32
  }
  func.func @transform_9(%arg0: i32) -> (i32, i32) {
    %c0_i32 = arith.constant 0 : i32
    %c0_i32_0 = arith.constant 0 : i32
    %c0_i32_1 = arith.constant 0 : i32
    return %c0_i32, %c0_i32_0 : i32, i32
  }
  func.func @transform_10(%arg0: i32) -> (i32, i32) {
    %c0_i32 = arith.constant 0 : i32
    %c0_i32_0 = arith.constant 0 : i32
    %c0_i32_1 = arith.constant 0 : i32
    return %c0_i32, %c0_i32_0 : i32, i32
  }
  func.func @transform_11(%arg0: i32) -> (i32, i32) {
    %c0_i32 = arith.constant 0 : i32
    %c0_i32_0 = arith.constant 0 : i32
    return %arg0, %c0_i32 : i32, i32
  }
  func.func @transform_12(%arg0: i32) -> (i32, i32) {
    %c0_i32 = arith.constant 0 : i32
    %c0_i32_0 = arith.constant 0 : i32
    return %arg0, %c0_i32 : i32, i32
  }
}

</mosaic_0001>

<llo_original>
// kernel: tpu_custom_call.1
$region0: #{tpu_custom_call.1}
  #allocation0 [shape = 'u32[]', space=smem, size = 0x4, offset = 0x4, fixed_abs, tag = 'smem constant byte address 0x4 - core index']
  #allocation1 [shape = 'u32[144,128]{1,0:T(1,128)}', space=vmem, size = 0x12000, scoped, tag = 'internal scratch']
  %s0 = inlined_call_operand.vmem [shape: f32[2,8,16], index: 0, kind: input, shape index: {}]
  %s1 = inlined_call_operand.vmem [shape: f32[2,8], index: 1, kind: input, shape index: {}]
  %s2 = inlined_call_operand.vmem [shape: f32[2,8,1], index: 2, kind: input, shape index: {}]
  %s3 = inlined_call_operand.vmem [shape: f32[2,32], index: 3, kind: input, shape index: {}]
  %s4 = inlined_call_operand.vmem [shape: f32[8,8], index: 4, kind: input, shape index: {}]
  %s5 = inlined_call_operand.vmem [shape: f32[8,8], index: 5, kind: input, shape index: {}]
  %s6 = inlined_call_operand.vmem [shape: f32[16,16], index: 6, kind: input, shape index: {}]
  %s7 = inlined_call_operand.vmem [shape: f32[1,16], index: 7, kind: input, shape index: {}]
  %s8 = inlined_call_operand.vmem [shape: f32[8,16], index: 8, kind: input, shape index: {}]
  %s9 = inlined_call_operand.vmem [shape: f32[32,16], index: 9, kind: input, shape index: {}]
  %s10 = inlined_call_operand.vmem [shape: f32[1,32], index: 10, kind: input, shape index: {}]
  %s11 = inlined_call_operand.hbm [shape: f32[2,8], index: 11, kind: output, shape index: {0}]
  %s12 = inlined_call_operand.vmem [shape: f32[2,1], index: 12, kind: output, shape index: {1}]
  %13 = xla_tuple %s11, %s12
  %s14 = sld [smem:[#allocation0]]
  $region62: #{tpu_custom_call.1} parent=0
    _
  %s16 = ssub.s32 1, %s14
  %s17 = scalar_select 0, %s16, %s14
  $region1: #{tpu_custom_call.1} parent=0
    #allocation2 [shape = 'u8[1024]{0}', space=vmem, size = 0x400, scoped, tag = 'output window, operand 0, single buffered']
    #allocation3 [shape = 's32[1]{0}', space=sflag, size = 0x4, scoped, tag = 'scoped memory for tpu_custom_call.1']
    %18 = vsyncpa [#allocation3], 0
    // Predicated region
    $region2: #{tpu_custom_call.1} parent=1 // pred_check
      _
    $region3: #{tpu_custom_call.1} parent=1 // pred_check_branch
      %20 = sbr.rel (0) target = $region5
    $region4: #{tpu_custom_call.1} parent=1 // pred_region
      _
    $region5: #{tpu_custom_call.1} parent=1 // pred_fallthru
      _
    // Predicated region
    $region6: #{tpu_custom_call.1} parent=1 // pred_check
      _
    $region7: #{tpu_custom_call.1} parent=1 // pred_check_branch
      %22 = sbr.rel (0) target = $region9
    $region8: #{tpu_custom_call.1} parent=1 // pred_region
      _
    $region9: #{tpu_custom_call.1} parent=1 // pred_fallthru
      _
    // Predicated region
    $region10: #{tpu_custom_call.1} parent=1 // pred_check
      _
    $region11: #{tpu_custom_call.1} parent=1 // pred_check_branch
      %24 = sbr.rel (0) target = $region13
    $region12: #{tpu_custom_call.1} parent=1 // pred_region
      _
    $region13: #{tpu_custom_call.1} parent=1 // pred_fallthru
      _
    // Predicated region
    $region14: #{tpu_custom_call.1} parent=1 // pred_check
      _
    $region15: #{tpu_custom_call.1} parent=1 // pred_check_branch
      %26 = sbr.rel (0) target = $region17
    $region16: #{tpu_custom_call.1} parent=1 // pred_region
      _
    $region17: #{tpu_custom_call.1} parent=1 // pred_fallthru
      _
    // Predicated region
    $region18: #{tpu_custom_call.1} parent=1 // pred_check
      _
    $region19: #{tpu_custom_call.1} parent=1 // pred_check_branch
      %28 = sbr.rel (0) target = $region21
    $region20: #{tpu_custom_call.1} parent=1 // pred_region
      _
    $region21: #{tpu_custom_call.1} parent=1 // pred_fallthru
      _
    // Predicated region
    $region22: #{tpu_custom_call.1} parent=1 // pred_check
      _
    $region23: #{tpu_custom_call.1} parent=1 // pred_check_branch
      %30 = sbr.rel (0) target = $region25
    $region24: #{tpu_custom_call.1} parent=1 // pred_region
      _
    $region25: #{tpu_custom_call.1} parent=1 // pred_fallthru
      _
    // Predicated region
    $region26: #{tpu_custom_call.1} parent=1 // pred_check
      _
    $region27: #{tpu_custom_call.1} parent=1 // pred_check_branch
      %32 = sbr.rel (0) target = $region29
    $region28: #{tpu_custom_call.1} parent=1 // pred_region
      _
    $region29: #{tpu_custom_call.1} parent=1 // pred_fallthru
      _
    // Predicated region
    $region30: #{tpu_custom_call.1} parent=1 // pred_check
      _
    $region31: #{tpu_custom_call.1} parent=1 // pred_check_branch
      %34 = sbr.rel (0) target = $region33
    $region32: #{tpu_custom_call.1} parent=1 // pred_region
      _
    $region33: #{tpu_custom_call.1} parent=1 // pred_fallthru
      _
    // Predicated region
    $region34: #{tpu_custom_call.1} parent=1 // pred_check
      _
    $region35: #{tpu_custom_call.1} parent=1 // pred_check_branch
      %36 = sbr.rel (0) target = $region37
    $region36: #{tpu_custom_call.1} parent=1 // pred_region
      _
    $region37: #{tpu_custom_call.1} parent=1 // pred_fallthru
      _
    // Predicated region
    $region38: #{tpu_custom_call.1} parent=1 // pred_check
      _
    $region39: #{tpu_custom_call.1} parent=1 // pred_check_branch
      %38 = sbr.rel (0) target = $region41
    $region40: #{tpu_custom_call.1} parent=1 // pred_region
      _
    $region41: #{tpu_custom_call.1} parent=1 // pred_fallthru
      _
    // Predicated region
    $region42: #{tpu_custom_call.1} parent=1 // pred_check
      _
    $region43: #{tpu_custom_call.1} parent=1 // pred_check_branch
      %40 = sbr.rel (0) target = $region45
    $region44: #{tpu_custom_call.1} parent=1 // pred_region
      _
    $region45: #{tpu_custom_call.1} parent=1 // pred_fallthru
      _
    %v41 = vld [vmem:[%s4] sm:$0xff]
    %v42 = vld [vmem:[%s5] sm:$0xff]
    %v43 = vld [vmem:[%s6] sm:$0xff]
    %v44 = vld [vmem:[%s6 + $0x8] sm:$0xff]
    %v45 = vld [vmem:[%s7] sm:$0x1]
    %v46 = vld [vmem:[%s8] sm:$0xff]
    %v47 = vld [vmem:[%s10] sm:$0x1]
    %v48 = vld [vmem:[%s0] sm:$0xff]
    %v49 = vld [vmem:[%s0 + $0x8] sm:$0xff]
    %v50 = vld [vmem:[%s1] sm:$0x3]
    %v51 = vld [vmem:[%s3] sm:$0x3]
    %v52 = vld [vmem:[%s2] sm:$0xff]
    %v53 = vld [vmem:[%s2 + $0x8] sm:$0xff]
    %vm54 = vcmask 64512
    %v56 = vsel %vm54, %v41, 0
    %58 = vmatprep.subr.mxu0 0.0
    %59 = vmatpush1.msra.mxu0 %v48
    %60 = vmatprep.subr.mxu0 0.0
    %61 = vmatpush1.msra.mxu0 0.0
    %62 = vmatprep.subr.mxu0 0.0
    %63 = vmatpush1.msra.mxu0 0.0
    %64 = vmatprep.subr.mxu0 0.0
    %65 = vmatpush1.msra.mxu0 0.0
    %66 = vmatprep.subr.mxu0 0.0
    %67 = vmatpush1.msra.mxu0 0.0
    %68 = vmatprep.subr.mxu0 0.0
    %69 = vmatpush1.msra.mxu0 0.0
    %70 = vmatprep.subr.mxu0 0.0
    %71 = vmatpush1.msra.mxu0 0.0
    %72 = vmatprep.subr.mxu0 0.0
    %73 = vmatpush1.msra.mxu0 0.0
    %74 = vmatprep.subr.mxu0 0.0
    %75 = vmatpush1.msra.mxu0 0.0
    %76 = vmatprep.subr.mxu0 0.0
    %77 = vmatpush1.msra.mxu0 0.0
    %78 = vmatprep.subr.mxu0 0.0
    %79 = vmatpush1.msra.mxu0 0.0
    %80 = vmatprep.subr.mxu0 0.0
    %81 = vmatpush1.msra.mxu0 0.0
    %82 = vmatprep.subr.mxu0 0.0
    %83 = vmatpush1.msra.mxu0 0.0
    %84 = vmatprep.subr.mxu0 0.0
    %85 = vmatpush1.msra.mxu0 0.0
    %86 = vmatprep.subr.mxu0 0.0
    %87 = vmatpush1.msra.mxu0 0.0
    %88 = vmatprep.subr.mxu0 0.0
    %89 = vmatpush1.msra.mxu0 0.0
    %90 = vmatprep.subr.mxu0 0.0
    %91 = vmatpush1.msra.mxu0 0.0
    %92 = vmatprep.subr.mxu0 0.0
    %93 = vmatpush1.msra.mxu0 0.0
    %94 = vmatprep.subr.mxu0 0.0
    %95 = vmatpush1.msra.mxu0 0.0
    %96 = vmatprep.subr.mxu0 0.0
    %97 = vmatpush1.msra.mxu0 0.0
    %98 = vmatprep.subr.mxu0 0.0
    %99 = vmatpush1.msra.mxu0 0.0
    %100 = vmatprep.subr.mxu0 0.0
    %101 = vmatpush1.msra.mxu0 0.0
    %102 = vmatprep.subr.mxu0 0.0
    %103 = vmatpush1.msra.mxu0 0.0
    %104 = vmatprep.subr.mxu0 0.0
    %105 = vmatpush1.msra.mxu0 0.0
    %106 = vmatprep.subr.mxu0 0.0
    %107 = vmatpush1.msra.mxu0 0.0
    %108 = vmatprep.subr.mxu0 0.0
    %109 = vmatpush1.msra.mxu0 0.0
    %110 = vmatprep.subr.mxu0 0.0
    %111 = vmatpush1.msra.mxu0 0.0
    %112 = vmatprep.subr.mxu0 0.0
    %113 = vmatpush1.msra.mxu0 0.0
    %114 = vmatprep.subr.mxu0 0.0
    %115 = vmatpush1.msra.mxu0 0.0
    %116 = vmatprep.subr.mxu0 0.0
    %117 = vmatpush1.msra.mxu0 0.0
    %118 = vmatprep.subr.mxu0 0.0
    %119 = vmatpush1.msra.mxu0 0.0
    %120 = vmatprep.subr.mxu0 0.0
    %121 = vmatpush1.msra.mxu0 0.0
    %122 = vmatprep.mubr.f32.mxu0 0.0
    %123 = vmatmul.mubr.f32.gmra.mrb[0].mxu0 %v56
    %v124 = vpop.f32.mrb[0].mxu0
    %v125 = vadd.f32 0.0, %v124
    %v126 = vpop.f32.mrb[0].mxu0
    %127 = vdwg.mxu0
    %vm128 = vcmp.ge.f32.partialorder %v125, 0.0
    %v129 = vmul.f32 %v125, 0.2
    %v130 = vsel %vm128, %v125, %v129
    %v132 = vlaneseq
    %v133 = vshrl.u32 %v132, 7
    %v134 = vsub.s32 0, %v133
    %v135 = vrot.slane %v45, %v134
    %vm137 = vcmask 130048
    %v139 = vsel %vm137, %v130, 0
    %v142 = vsel %vm137, %v43, 0
    %v145 = vsel %vm137, %v44, 0
    %147 = vmatprep.subr.mxu0 0.0
    %148 = vmatpush1.xpose.msra.mxu0 %v142
    %149 = vmatprep.subr.mxu0 0.0
    %150 = vmatpush1.xpose.msra.mxu0 %v145
    %151 = vmatprep.subr.mxu0 0.0
    %152 = vmatpush1.xpose.msra.mxu0 0.0
    %153 = vmatprep.subr.mxu0 0.0
    %154 = vmatpush1.xpose.msra.mxu0 0.0
    %155 = vmatprep.subr.mxu0 0.0
    %156 = vmatpush1.xpose.msra.mxu0 0.0
    %157 = vmatprep.subr.mxu0 0.0
    %158 = vmatpush1.xpose.msra.mxu0 0.0
    %159 = vmatprep.subr.mxu0 0.0
    %160 = vmatpush1.xpose.msra.mxu0 0.0
    %161 = vmatprep.subr.mxu0 0.0
    %162 = vmatpush1.xpose.msra.mxu0 0.0
    %163 = vmatprep.subr.mxu0 0.0
    %164 = vmatpush1.xpose.msra.mxu0 0.0
    %165 = vmatprep.subr.mxu0 0.0
    %166 = vmatpush1.xpose.msra.mxu0 0.0
    %167 = vmatprep.subr.mxu0 0.0
    %168 = vmatpush1.xpose.msra.mxu0 0.0
    %169 = vmatprep.subr.mxu0 0.0
    %170 = vmatpush1.xpose.msra.mxu0 0.0
    %171 = vmatprep.subr.mxu0 0.0
    %172 = vmatpush1.xpose.msra.mxu0 0.0
    %173 = vmatprep.subr.mxu0 0.0
    %174 = vmatpush1.xpose.msra.mxu0 0.0
    %175 = vmatprep.subr.mxu0 0.0
    %176 = vmatpush1.xpose.msra.mxu0 0.0
    %177 = vmatprep.subr.mxu0 0.0
    %178 = vmatpush1.xpose.msra.mxu0 0.0
    %179 = vmatprep.subr.mxu0 0.0
    %180 = vmatpush1.xpose.msra.mxu0 0.0
    %181 = vmatprep.subr.mxu0 0.0
    %182 = vmatpush1.xpose.msra.mxu0 0.0
    %183 = vmatprep.subr.mxu0 0.0
    %184 = vmatpush1.xpose.msra.mxu0 0.0
    %185 = vmatprep.subr.mxu0 0.0
    %186 = vmatpush1.xpose.msra.mxu0 0.0
    %187 = vmatprep.subr.mxu0 0.0
    %188 = vmatpush1.xpose.msra.mxu0 0.0
    %189 = vmatprep.subr.mxu0 0.0
    %190 = vmatpush1.xpose.msra.mxu0 0.0
    %191 = vmatprep.subr.mxu0 0.0
    %192 = vmatpush1.xpose.msra.mxu0 0.0
    %193 = vmatprep.subr.mxu0 0.0
    %194 = vmatpush1.xpose.msra.mxu0 0.0
    %195 = vmatprep.subr.mxu0 0.0
    %196 = vmatpush1.xpose.msra.mxu0 0.0
    %197 = vmatprep.subr.mxu0 0.0
    %198 = vmatpush1.xpose.msra.mxu0 0.0
    %199 = vmatprep.subr.mxu0 0.0
    %200 = vmatpush1.xpose.msra.mxu0 0.0
    %201 = vmatprep.subr.mxu0 0.0
    %202 = vmatpush1.xpose.msra.mxu0 0.0
    %203 = vmatprep.subr.mxu0 0.0
    %204 = vmatpush1.xpose.msra.mxu0 0.0
    %205 = vmatprep.subr.mxu0 0.0
    %206 = vmatpush1.xpose.msra.mxu0 0.0
    %207 = vmatprep.subr.mxu0 0.0
    %208 = vmatpush1.xpose.msra.mxu0 0.0
    %209 = vmatprep.subr.mxu0 0.0
    %210 = vmatpush1.xpose.msra.mxu0 0.0
    %211 = vmatprep.mubr.f32.mxu0 0.0
    %212 = vmatmul.mubr.f32.gmra.mrb[0].mxu0 %v139
    %v213 = vpop.f32.mrb[0].mxu0
    %v214 = vadd.f32 %v135, %v213
    %v215 = vpop.f32.mrb[0].mxu0
    %216 = vdwg.mxu0
    %vm217 = vcmp.ge.f32.partialorder %v214, 0.0
    %v218 = vmul.f32 %v214, 0.2
    %v219 = vsel %vm217, %v214, %v218
    %v220 = vadd.f32 %v48, %v219
    %222 = vset.pattern.permute.xlu0 0
    %223 = vperm.xlu0 %222, %v52
    %v224 = vpop.permute.xlu0 %223
    %v227 = vsel %vm137, %v46, 0
    %v230 = vsel %vm137, %v220, 0
    %232 = vmatprep.subr.mxu0 0.0
    %233 = vmatpush1.xpose.msra.mxu0 %v230
    %234 = vmatprep.subr.mxu0 0.0
    %235 = vmatpush1.xpose.msra.mxu0 0.0
    %236 = vmatprep.subr.mxu0 0.0
    %237 = vmatpush1.xpose.msra.mxu0 0.0
    %238 = vmatprep.subr.mxu0 0.0
    %239 = vmatpush1.xpose.msra.mxu0 0.0
    %240 = vmatprep.subr.mxu0 0.0
    %241 = vmatpush1.xpose.msra.mxu0 0.0
    %242 = vmatprep.subr.mxu0 0.0
    %243 = vmatpush1.xpose.msra.mxu0 0.0
    %244 = vmatprep.subr.mxu0 0.0
    %245 = vmatpush1.xpose.msra.mxu0 0.0
    %246 = vmatprep.subr.mxu0 0.0
    %247 = vmatpush1.xpose.msra.mxu0 0.0
    %248 = vmatprep.subr.mxu0 0.0
    %249 = vmatpush1.xpose.msra.mxu0 0.0
    %250 = vmatprep.subr.mxu0 0.0
    %251 = vmatpush1.xpose.msra.mxu0 0.0
    %252 = vmatprep.subr.mxu0 0.0
    %253 = vmatpush1.xpose.msra.mxu0 0.0
    %254 = vmatprep.subr.mxu0 0.0
    %255 = vmatpush1.xpose.msra.mxu0 0.0
    %256 = vmatprep.subr.mxu0 0.0
    %257 = vmatpush1.xpose.msra.mxu0 0.0
    %258 = vmatprep.subr.mxu0 0.0
    %259 = vmatpush1.xpose.msra.mxu0 0.0
    %260 = vmatprep.subr.mxu0 0.0
    %261 = vmatpush1.xpose.msra.mxu0 0.0
    %262 = vmatprep.subr.mxu0 0.0
    %263 = vmatpush1.xpose.msra.mxu0 0.0
    %264 = vmatprep.subr.mxu0 0.0
    %265 = vmatpush1.xpose.msra.mxu0 0.0
    %266 = vmatprep.subr.mxu0 0.0
    %267 = vmatpush1.xpose.msra.mxu0 0.0
    %268 = vmatprep.subr.mxu0 0.0
    %269 = vmatpush1.xpose.msra.mxu0 0.0
    %270 = vmatprep.subr.mxu0 0.0
    %271 = vmatpush1.xpose.msra.mxu0 0.0
    %272 = vmatprep.subr.mxu0 0.0
    %273 = vmatpush1.xpose.msra.mxu0 0.0
    %274 = vmatprep.subr.mxu0 0.0
    %275 = vmatpush1.xpose.msra.mxu0 0.0
    %276 = vmatprep.subr.mxu0 0.0
    %277 = vmatpush1.xpose.msra.mxu0 0.0
    %278 = vmatprep.subr.mxu0 0.0
    %279 = vmatpush1.xpose.msra.mxu0 0.0
    %280 = vmatprep.subr.mxu0 0.0
    %281 = vmatpush1.xpose.msra.mxu0 0.0
    %282 = vmatprep.subr.mxu0 0.0
    %283 = vmatpush1.xpose.msra.mxu0 0.0
    %284 = vmatprep.subr.mxu0 0.0
    %285 = vmatpush1.xpose.msra.mxu0 0.0
    %286 = vmatprep.subr.mxu0 0.0
    %287 = vmatpush1.xpose.msra.mxu0 0.0
    %288 = vmatprep.subr.mxu0 0.0
    %289 = vmatpush1.xpose.msra.mxu0 0.0
    %290 = vmatprep.subr.mxu0 0.0
    %291 = vmatpush1.xpose.msra.mxu0 0.0
    %292 = vmatprep.subr.mxu0 0.0
    %293 = vmatpush1.xpose.msra.mxu0 0.0
    %294 = vmatprep.subr.mxu0 0.0
    %295 = vmatpush1.xpose.msra.mxu0 0.0
    %296 = vmatprep.mubr.f32.mxu0 0.0
    %297 = vmatmul.mubr.f32.gmra.mrb[0].mxu0 %v227
    %v298 = vpop.f32.mrb[0].mxu0
    %v299 = vadd.f32 %v224, %v298
    %v300 = vpop.f32.mrb[0].mxu0
    %301 = vdwg.mxu0
    %v302 = vxor.u32 %v299, 2147483648
    %v303 = vmul.f32 %v302, 1.442695
    %v304 = vpow.pop %v303
    %v305 = vadd.f32 %v304, 1.0
    %v306 = vrcp.pop %v305
    %v307 = vmul.f32 1.0, %v306
    %v308 = vsel %vm54, %v307, 0.0
    %309 = vadd.xlane.f32.xlu0 %v308
    %v310 = vpop.xlane.xlu0 %309
    %v311 = vrsqrt.pop %v310
    %v312 = vmul.f32 %v311, 0.25
    %vm313 = vcmask 7168
    %v315 = vsel %vm313, %v312, 0
    %317 = vmatprep.subr.mxu0 0.0
    %318 = vmatpush1.xpose.msra.mxu0 %v315
    %319 = vmatprep.subr.mxu0 0.0
    %320 = vmatpush1.xpose.msra.mxu0 0.0
    %321 = vmatprep.subr.mxu0 0.0
    %322 = vmatpush1.xpose.msra.mxu0 0.0
    %323 = vmatprep.subr.mxu0 0.0
    %324 = vmatpush1.xpose.msra.mxu0 0.0
    %325 = vmatprep.subr.mxu0 0.0
    %326 = vmatpush1.xpose.msra.mxu0 0.0
    %327 = vmatprep.subr.mxu0 0.0
    %328 = vmatpush1.xpose.msra.mxu0 0.0
    %329 = vmatprep.subr.mxu0 0.0
    %330 = vmatpush1.xpose.msra.mxu0 0.0
    %331 = vmatprep.subr.mxu0 0.0
    %332 = vmatpush1.xpose.msra.mxu0 0.0
    %333 = vmatprep.subr.mxu0 0.0
    %334 = vmatpush1.xpose.msra.mxu0 0.0
    %335 = vmatprep.subr.mxu0 0.0
    %336 = vmatpush1.xpose.msra.mxu0 0.0
    %337 = vmatprep.subr.mxu0 0.0
    %338 = vmatpush1.xpose.msra.mxu0 0.0
    %339 = vmatprep.subr.mxu0 0.0
    %340 = vmatpush1.xpose.msra.mxu0 0.0
    %341 = vmatprep.subr.mxu0 0.0
    %342 = vmatpush1.xpose.msra.mxu0 0.0
    %343 = vmatprep.subr.mxu0 0.0
    %344 = vmatpush1.xpose.msra.mxu0 0.0
    %345 = vmatprep.subr.mxu0 0.0
    %346 = vmatpush1.xpose.msra.mxu0 0.0
    %347 = vmatprep.subr.mxu0 0.0
    %348 = vmatpush1.xpose.msra.mxu0 0.0
    %349 = vmatprep.subr.mxu0 0.0
    %350 = vmatpush1.xpose.msra.mxu0 0.0
    %351 = vmatprep.subr.mxu0 0.0
    %352 = vmatpush1.xpose.msra.mxu0 0.0
    %353 = vmatprep.subr.mxu0 0.0
    %354 = vmatpush1.xpose.msra.mxu0 0.0
    %355 = vmatprep.subr.mxu0 0.0
    %356 = vmatpush1.xpose.msra.mxu0 0.0
    %357 = vmatprep.subr.mxu0 0.0
    %358 = vmatpush1.xpose.msra.mxu0 0.0
    %359 = vmatprep.subr.mxu0 0.0
    %360 = vmatpush1.xpose.msra.mxu0 0.0
    %361 = vmatprep.subr.mxu0 0.0
    %362 = vmatpush1.xpose.msra.mxu0 0.0
    %363 = vmatprep.subr.mxu0 0.0
    %364 = vmatpush1.xpose.msra.mxu0 0.0
    %365 = vmatprep.subr.mxu0 0.0
    %366 = vmatpush1.xpose.msra.mxu0 0.0
    %367 = vmatprep.subr.mxu0 0.0
    %368 = vmatpush1.xpose.msra.mxu0 0.0
    %369 = vmatprep.subr.mxu0 0.0
    %370 = vmatpush1.xpose.msra.mxu0 0.0
    %371 = vmatprep.subr.mxu0 0.0
    %372 = vmatpush1.xpose.msra.mxu0 0.0
    %373 = vmatprep.subr.mxu0 0.0
    %374 = vmatpush1.xpose.msra.mxu0 0.0
    %375 = vmatprep.subr.mxu0 0.0
    %376 = vmatpush1.xpose.msra.mxu0 0.0
    %377 = vmatprep.subr.mxu0 0.0
    %378 = vmatpush1.xpose.msra.mxu0 0.0
    %379 = vmatprep.subr.mxu0 0.0
    %380 = vmatpush1.xpose.msra.mxu0 0.0
    %381 = vmatprep.mubr.f32.mxu0 0.0
    %382 = vmatmul.mubr.f32.gmra.mrb[0].mxu0 %v315
    %v383 = vpop.f32.mrb[0].mxu0
    %v384 = vadd.f32 0.0, %v383
    %v385 = vpop.f32.mrb[0].mxu0
    %386 = vdwg.mxu0
    %v387 = vmul.f32 %v384, %v307
    %v388 = vadd.f32 %v387, %v42
    %v390 = vsel %vm54, %v50, 0
    %v393 = vsel %vm54, %v388, 0
    %395 = vmatprep.subr.mxu0 0.0
    %396 = vmatpush1.xpose.msra.mxu0 %v393
    %397 = vmatprep.subr.mxu0 0.0
    %398 = vmatpush1.xpose.msra.mxu0 0.0
    %399 = vmatprep.subr.mxu0 0.0
    %400 = vmatpush1.xpose.msra.mxu0 0.0
    %401 = vmatprep.subr.mxu0 0.0
    %402 = vmatpush1.xpose.msra.mxu0 0.0
    %403 = vmatprep.subr.mxu0 0.0
    %404 = vmatpush1.xpose.msra.mxu0 0.0
    %405 = vmatprep.subr.mxu0 0.0
    %406 = vmatpush1.xpose.msra.mxu0 0.0
    %407 = vmatprep.subr.mxu0 0.0
    %408 = vmatpush1.xpose.msra.mxu0 0.0
    %409 = vmatprep.subr.mxu0 0.0
    %410 = vmatpush1.xpose.msra.mxu0 0.0
    %411 = vmatprep.subr.mxu0 0.0
    %412 = vmatpush1.xpose.msra.mxu0 0.0
    %413 = vmatprep.subr.mxu0 0.0
    %414 = vmatpush1.xpose.msra.mxu0 0.0
    %415 = vmatprep.subr.mxu0 0.0
    %416 = vmatpush1.xpose.msra.mxu0 0.0
    %417 = vmatprep.subr.mxu0 0.0
    %418 = vmatpush1.xpose.msra.mxu0 0.0
    %419 = vmatprep.subr.mxu0 0.0
    %420 = vmatpush1.xpose.msra.mxu0 0.0
    %421 = vmatprep.subr.mxu0 0.0
    %422 = vmatpush1.xpose.msra.mxu0 0.0
    %423 = vmatprep.subr.mxu0 0.0
    %424 = vmatpush1.xpose.msra.mxu0 0.0
    %425 = vmatprep.subr.mxu0 0.0
    %426 = vmatpush1.xpose.msra.mxu0 0.0
    %427 = vmatprep.subr.mxu0 0.0
    %428 = vmatpush1.xpose.msra.mxu0 0.0
    %429 = vmatprep.subr.mxu0 0.0
    %430 = vmatpush1.xpose.msra.mxu0 0.0
    %431 = vmatprep.subr.mxu0 0.0
    %432 = vmatpush1.xpose.msra.mxu0 0.0
    %433 = vmatprep.subr.mxu0 0.0
    %434 = vmatpush1.xpose.msra.mxu0 0.0
    %435 = vmatprep.subr.mxu0 0.0
    %436 = vmatpush1.xpose.msra.mxu0 0.0
    %437 = vmatprep.subr.mxu0 0.0
    %438 = vmatpush1.xpose.msra.mxu0 0.0
    %439 = vmatprep.subr.mxu0 0.0
    %440 = vmatpush1.xpose.msra.mxu0 0.0
    %441 = vmatprep.subr.mxu0 0.0
    %442 = vmatpush1.xpose.msra.mxu0 0.0
    %443 = vmatprep.subr.mxu0 0.0
    %444 = vmatpush1.xpose.msra.mxu0 0.0
    %445 = vmatprep.subr.mxu0 0.0
    %446 = vmatpush1.xpose.msra.mxu0 0.0
    %447 = vmatprep.subr.mxu0 0.0
    %448 = vmatpush1.xpose.msra.mxu0 0.0
    %449 = vmatprep.subr.mxu0 0.0
    %450 = vmatpush1.xpose.msra.mxu0 0.0
    %451 = vmatprep.subr.mxu0 0.0
    %452 = vmatpush1.xpose.msra.mxu0 0.0
    %453 = vmatprep.subr.mxu0 0.0
    %454 = vmatpush1.xpose.msra.mxu0 0.0
    %455 = vmatprep.subr.mxu0 0.0
    %456 = vmatpush1.xpose.msra.mxu0 0.0
    %457 = vmatprep.subr.mxu0 0.0
    %458 = vmatpush1.xpose.msra.mxu0 0.0
    %459 = vmatprep.mubr.f32.mxu0 0.0
    %460 = vmatmul.mubr.f32.gmra.mrb[0].mxu0 %v390
    %v461 = vpop.f32.mrb[0].mxu0
    %v462 = vadd.f32 0.0, %v461
    %v463 = vpop.f32.mrb[0].mxu0
    %464 = vdwg.mxu0
    %v465 = vsub.f32 %v50, %v462
    %v466 = vmul.f32 %v465, %v465
    %vm467 = vcmask 57344
    %v468 = vsel %vm467, %v466, 0.0
    %469 = vadd.xlane.f32.xlu0 %v468
    %v470 = vpop.xlane.xlu0 %469
    %v471 = vrsqrt.pop %v470
    %v472 = vmul.f32 %v470, %v471
    %vm473 = vcmp.eq.f32.partialorder %v470, inf
    %v474 = vsel %vm473, %v470, %v472
    %vm475 = vcmp.eq.f32.partialorder %v470, 0.0
    %v476 = vand.u32 %v470, 2147483648
    %v477 = vsel %vm475, %v476, %v474
    %478 = vmatprep.subr.mxu0 0.0
    %479 = vmatpush1.msra.mxu0 %v220
    %480 = vmatprep.subr.mxu0 0.0
    %481 = vmatpush1.msra.mxu0 0.0
    %482 = vmatprep.subr.mxu0 0.0
    %483 = vmatpush1.msra.mxu0 0.0
    %484 = vmatprep.subr.mxu0 0.0
    %485 = vmatpush1.msra.mxu0 0.0
    %486 = vmatprep.subr.mxu0 0.0
    %487 = vmatpush1.msra.mxu0 0.0
    %488 = vmatprep.subr.mxu0 0.0
    %489 = vmatpush1.msra.mxu0 0.0
    %490 = vmatprep.subr.mxu0 0.0
    %491 = vmatpush1.msra.mxu0 0.0
    %492 = vmatprep.subr.mxu0 0.0
    %493 = vmatpush1.msra.mxu0 0.0
    %494 = vmatprep.subr.mxu0 0.0
    %495 = vmatpush1.msra.mxu0 0.0
    %496 = vmatprep.subr.mxu0 0.0
    %497 = vmatpush1.msra.mxu0 0.0
    %498 = vmatprep.subr.mxu0 0.0
    %499 = vmatpush1.msra.mxu0 0.0
    %500 = vmatprep.subr.mxu0 0.0
    %501 = vmatpush1.msra.mxu0 0.0
    %502 = vmatprep.subr.mxu0 0.0
    %503 = vmatpush1.msra.mxu0 0.0
    %504 = vmatprep.subr.mxu0 0.0
    %505 = vmatpush1.msra.mxu0 0.0
    %506 = vmatprep.subr.mxu0 0.0
    %507 = vmatpush1.msra.mxu0 0.0
    %508 = vmatprep.subr.mxu0 0.0
    %509 = vmatpush1.msra.mxu0 0.0
    %510 = vmatprep.subr.mxu0 0.0
    %511 = vmatpush1.msra.mxu0 0.0
    %512 = vmatprep.subr.mxu0 0.0
    %513 = vmatpush1.msra.mxu0 0.0
    %514 = vmatprep.subr.mxu0 0.0
    %515 = vmatpush1.msra.mxu0 0.0
    %516 = vmatprep.subr.mxu0 0.0
    %517 = vmatpush1.msra.mxu0 0.0
    %518 = vmatprep.subr.mxu0 0.0
    %519 = vmatpush1.msra.mxu0 0.0
    %520 = vmatprep.subr.mxu0 0.0
    %521 = vmatpush1.msra.mxu0 0.0
    %522 = vmatprep.subr.mxu0 0.0
    %523 = vmatpush1.msra.mxu0 0.0
    %524 = vmatprep.subr.mxu0 0.0
    %525 = vmatpush1.msra.mxu0 0.0
    %526 = vmatprep.subr.mxu0 0.0
    %527 = vmatpush1.msra.mxu0 0.0
    %528 = vmatprep.subr.mxu0 0.0
    %529 = vmatpush1.msra.mxu0 0.0
    %530 = vmatprep.subr.mxu0 0.0
    %531 = vmatpush1.msra.mxu0 0.0
    %532 = vmatprep.subr.mxu0 0.0
    %533 = vmatpush1.msra.mxu0 0.0
    %534 = vmatprep.subr.mxu0 0.0
    %535 = vmatpush1.msra.mxu0 0.0
    %536 = vmatprep.subr.mxu0 0.0
    %537 = vmatpush1.msra.mxu0 0.0
    %538 = vmatprep.subr.mxu0 0.0
    %539 = vmatpush1.msra.mxu0 0.0
    %540 = vmatprep.subr.mxu0 0.0
    %541 = vmatpush1.msra.mxu0 0.0
    %542 = vmatprep.mubr.f32.mxu0 0.0
    %543 = vmatmul.mubr.f32.gmra.mrb[0].mxu0 %v393
    %v544 = vpop.f32.mrb[0].mxu0
    %v545 = vadd.f32 0.0, %v544
    %v546 = vpop.f32.mrb[0].mxu0
    %547 = vdwg.mxu0
    %vm548 = vcmp.ge.f32.partialorder %v545, 0.0
    %v549 = vmul.f32 %v545, 0.2
    %v550 = vsel %vm548, %v545, %v549
    %v551 = vld [vmem:[%s9] sm:$0xff]
    %v552 = vld [vmem:[%s9 + $0x8] sm:$0xff]
    %v553 = vld [vmem:[%s9 + $0x10] sm:$0xff]
    %v554 = vld [vmem:[%s9 + $0x18] sm:$0xff]
    %v556 = vlaneseq
    %v557 = vshrl.u32 %v556, 7
    %v558 = vsub.s32 0, %v557
    %v559 = vrot.slane %v47, %v558
    %v562 = vsel %vm137, %v550, 0
    %v565 = vsel %vm137, %v551, 0
    %v568 = vsel %vm137, %v552, 0
    %v571 = vsel %vm137, %v553, 0
    %v574 = vsel %vm137, %v554, 0
    %576 = vmatprep.subr.mxu0 0.0
    %577 = vmatpush1.xpose.msra.mxu0 %v565
    %578 = vmatprep.subr.mxu0 0.0
    %579 = vmatpush1.xpose.msra.mxu0 %v568
    %580 = vmatprep.subr.mxu0 0.0
    %581 = vmatpush1.xpose.msra.mxu0 %v571
    %582 = vmatprep.subr.mxu0 0.0
    %583 = vmatpush1.xpose.msra.mxu0 %v574
    %584 = vmatprep.subr.mxu0 0.0
    %585 = vmatpush1.xpose.msra.mxu0 0.0
    %586 = vmatprep.subr.mxu0 0.0
    %587 = vmatpush1.xpose.msra.mxu0 0.0
    %588 = vmatprep.subr.mxu0 0.0
    %589 = vmatpush1.xpose.msra.mxu0 0.0
    %590 = vmatprep.subr.mxu0 0.0
    %591 = vmatpush1.xpose.msra.mxu0 0.0
    %592 = vmatprep.subr.mxu0 0.0
    %593 = vmatpush1.xpose.msra.mxu0 0.0
    %594 = vmatprep.subr.mxu0 0.0
    %595 = vmatpush1.xpose.msra.mxu0 0.0
    %596 = vmatprep.subr.mxu0 0.0
    %597 = vmatpush1.xpose.msra.mxu0 0.0
    %598 = vmatprep.subr.mxu0 0.0
    %599 = vmatpush1.xpose.msra.mxu0 0.0
    %600 = vmatprep.subr.mxu0 0.0
    %601 = vmatpush1.xpose.msra.mxu0 0.0
    %602 = vmatprep.subr.mxu0 0.0
    %603 = vmatpush1.xpose.msra.mxu0 0.0
    %604 = vmatprep.subr.mxu0 0.0
    %605 = vmatpush1.xpose.msra.mxu0 0.0
    %606 = vmatprep.subr.mxu0 0.0
    %607 = vmatpush1.xpose.msra.mxu0 0.0
    %608 = vmatprep.subr.mxu0 0.0
    %609 = vmatpush1.xpose.msra.mxu0 0.0
    %610 = vmatprep.subr.mxu0 0.0
    %611 = vmatpush1.xpose.msra.mxu0 0.0
    %612 = vmatprep.subr.mxu0 0.0
    %613 = vmatpush1.xpose.msra.mxu0 0.0
    %614 = vmatprep.subr.mxu0 0.0
    %615 = vmatpush1.xpose.msra.mxu0 0.0
    %616 = vmatprep.subr.mxu0 0.0
    %617 = vmatpush1.xpose.msra.mxu0 0.0
    %618 = vmatprep.subr.mxu0 0.0
    %619 = vmatpush1.xpose.msra.mxu0 0.0
    %620 = vmatprep.subr.mxu0 0.0
    %621 = vmatpush1.xpose.msra.mxu0 0.0
    %622 = vmatprep.subr.mxu0 0.0
    %623 = vmatpush1.xpose.msra.mxu0 0.0
    %624 = vmatprep.subr.mxu0 0.0
    %625 = vmatpush1.xpose.msra.mxu0 0.0
    %626 = vmatprep.subr.mxu0 0.0
    %627 = vmatpush1.xpose.msra.mxu0 0.0
    %628 = vmatprep.subr.mxu0 0.0
    %629 = vmatpush1.xpose.msra.mxu0 0.0
    %630 = vmatprep.subr.mxu0 0.0
    %631 = vmatpush1.xpose.msra.mxu0 0.0
    %632 = vmatprep.subr.mxu0 0.0
    %633 = vmatpush1.xpose.msra.mxu0 0.0
    %634 = vmatprep.subr.mxu0 0.0
    %635 = vmatpush1.xpose.msra.mxu0 0.0
    %636 = vmatprep.subr.mxu0 0.0
    %637 = vmatpush1.xpose.msra.mxu0 0.0
    %638 = vmatprep.subr.mxu0 0.0
    %639 = vmatpush1.xpose.msra.mxu0 0.0
    %640 = vmatprep.mubr.f32.mxu0 0.0
    %641 = vmatmul.mubr.f32.gmra.mrb[0].mxu0 %v562
    %v642 = vpop.f32.mrb[0].mxu0
    %v643 = vadd.f32 %v559, %v642
    %v644 = vpop.f32.mrb[0].mxu0
    %645 = vdwg.mxu0
    %vm646 = vcmp.ge.f32.partialorder %v643, 0.0
    %v647 = vmul.f32 %v643, 0.2
    %v648 = vsel %vm646, %v643, %v647
    %vm649 = vcmask 261120
    %v651 = vsel %vm649, %v51, 0
    %v654 = vsel %vm649, %v648, 0
    %656 = vmatprep.subr.mxu0 0.0
    %657 = vmatpush1.xpose.msra.mxu0 %v654
    %658 = vmatprep.subr.mxu0 0.0
    %659 = vmatpush1.xpose.msra.mxu0 0.0
    %660 = vmatprep.subr.mxu0 0.0
    %661 = vmatpush1.xpose.msra.mxu0 0.0
    %662 = vmatprep.subr.mxu0 0.0
    %663 = vmatpush1.xpose.msra.mxu0 0.0
    %664 = vmatprep.subr.mxu0 0.0
    %665 = vmatpush1.xpose.msra.mxu0 0.0
    %666 = vmatprep.subr.mxu0 0.0
    %667 = vmatpush1.xpose.msra.mxu0 0.0
    %668 = vmatprep.subr.mxu0 0.0
    %669 = vmatpush1.xpose.msra.mxu0 0.0
    %670 = vmatprep.subr.mxu0 0.0
    %671 = vmatpush1.xpose.msra.mxu0 0.0
    %672 = vmatprep.subr.mxu0 0.0
    %673 = vmatpush1.xpose.msra.mxu0 0.0
    %674 = vmatprep.subr.mxu0 0.0
    %675 = vmatpush1.xpose.msra.mxu0 0.0
    %676 = vmatprep.subr.mxu0 0.0
    %677 = vmatpush1.xpose.msra.mxu0 0.0
    %678 = vmatprep.subr.mxu0 0.0
    %679 = vmatpush1.xpose.msra.mxu0 0.0
    %680 = vmatprep.subr.mxu0 0.0
    %681 = vmatpush1.xpose.msra.mxu0 0.0
    %682 = vmatprep.subr.mxu0 0.0
    %683 = vmatpush1.xpose.msra.mxu0 0.0
    %684 = vmatprep.subr.mxu0 0.0
    %685 = vmatpush1.xpose.msra.mxu0 0.0
    %686 = vmatprep.subr.mxu0 0.0
    %687 = vmatpush1.xpose.msra.mxu0 0.0
    %688 = vmatprep.subr.mxu0 0.0
    %689 = vmatpush1.xpose.msra.mxu0 0.0
    %690 = vmatprep.subr.mxu0 0.0
    %691 = vmatpush1.xpose.msra.mxu0 0.0
    %692 = vmatprep.subr.mxu0 0.0
    %693 = vmatpush1.xpose.msra.mxu0 0.0
    %694 = vmatprep.subr.mxu0 0.0
    %695 = vmatpush1.xpose.msra.mxu0 0.0
    %696 = vmatprep.subr.mxu0 0.0
    %697 = vmatpush1.xpose.msra.mxu0 0.0
    %698 = vmatprep.subr.mxu0 0.0
    %699 = vmatpush1.xpose.msra.mxu0 0.0
    %700 = vmatprep.subr.mxu0 0.0
    %701 = vmatpush1.xpose.msra.mxu0 0.0
    %702 = vmatprep.subr.mxu0 0.0
    %703 = vmatpush1.xpose.msra.mxu0 0.0
    %704 = vmatprep.subr.mxu0 0.0
    %705 = vmatpush1.xpose.msra.mxu0 0.0
    %706 = vmatprep.subr.mxu0 0.0
    %707 = vmatpush1.xpose.msra.mxu0 0.0
    %708 = vmatprep.subr.mxu0 0.0
    %709 = vmatpush1.xpose.msra.mxu0 0.0
    %710 = vmatprep.subr.mxu0 0.0
    %711 = vmatpush1.xpose.msra.mxu0 0.0
    %712 = vmatprep.subr.mxu0 0.0
    %713 = vmatpush1.xpose.msra.mxu0 0.0
    %714 = vmatprep.subr.mxu0 0.0
    %715 = vmatpush1.xpose.msra.mxu0 0.0
    %716 = vmatprep.subr.mxu0 0.0
    %717 = vmatpush1.xpose.msra.mxu0 0.0
    %718 = vmatprep.subr.mxu0 0.0
    %719 = vmatpush1.xpose.msra.mxu0 0.0
    %720 = vmatprep.mubr.f32.mxu0 0.0
    %721 = vmatmul.mubr.f32.gmra.mrb[0].mxu0 %v651
    %v722 = vpop.f32.mrb[0].mxu0
    %v723 = vadd.f32 0.0, %v722
    %v724 = vpop.f32.mrb[0].mxu0
    %725 = vdwg.mxu0
    %726 = vmatprep.subr.mxu0 0.0
    %727 = vmatpush1.msra.mxu0 %v49
    %728 = vmatprep.subr.mxu0 0.0
    %729 = vmatpush1.msra.mxu0 0.0
    %730 = vmatprep.subr.mxu0 0.0
    %731 = vmatpush1.msra.mxu0 0.0
    %732 = vmatprep.subr.mxu0 0.0
    %733 = vmatpush1.msra.mxu0 0.0
    %734 = vmatprep.subr.mxu0 0.0
    %735 = vmatpush1.msra.mxu0 0.0
    %736 = vmatprep.subr.mxu0 0.0
    %737 = vmatpush1.msra.mxu0 0.0
    %738 = vmatprep.subr.mxu0 0.0
    %739 = vmatpush1.msra.mxu0 0.0
    %740 = vmatprep.subr.mxu0 0.0
    %741 = vmatpush1.msra.mxu0 0.0
    %742 = vmatprep.subr.mxu0 0.0
    %743 = vmatpush1.msra.mxu0 0.0
    %744 = vmatprep.subr.mxu0 0.0
    %745 = vmatpush1.msra.mxu0 0.0
    %746 = vmatprep.subr.mxu0 0.0
    %747 = vmatpush1.msra.mxu0 0.0
    %748 = vmatprep.subr.mxu0 0.0
    %749 = vmatpush1.msra.mxu0 0.0
    %750 = vmatprep.subr.mxu0 0.0
    %751 = vmatpush1.msra.mxu0 0.0
    %752 = vmatprep.subr.mxu0 0.0
    %753 = vmatpush1.msra.mxu0 0.0
    %754 = vmatprep.subr.mxu0 0.0
    %755 = vmatpush1.msra.mxu0 0.0
    %756 = vmatprep.subr.mxu0 0.0
    %757 = vmatpush1.msra.mxu0 0.0
    %758 = vmatprep.subr.mxu0 0.0
    %759 = vmatpush1.msra.mxu0 0.0
    %760 = vmatprep.subr.mxu0 0.0
    %761 = vmatpush1.msra.mxu0 0.0
    %762 = vmatprep.subr.mxu0 0.0
    %763 = vmatpush1.msra.mxu0 0.0
    %764 = vmatprep.subr.mxu0 0.0
    %765 = vmatpush1.msra.mxu0 0.0
    %766 = vmatprep.subr.mxu0 0.0
    %767 = vmatpush1.msra.mxu0 0.0
    %768 = vmatprep.subr.mxu0 0.0
    %769 = vmatpush1.msra.mxu0 0.0
    %770 = vmatprep.subr.mxu0 0.0
    %771 = vmatpush1.msra.mxu0 0.0
    %772 = vmatprep.subr.mxu0 0.0
    %773 = vmatpush1.msra.mxu0 0.0
    %774 = vmatprep.subr.mxu0 0.0
    %775 = vmatpush1.msra.mxu0 0.0
    %776 = vmatprep.subr.mxu0 0.0
    %777 = vmatpush1.msra.mxu0 0.0
    %778 = vmatprep.subr.mxu0 0.0
    %779 = vmatpush1.msra.mxu0 0.0
    %780 = vmatprep.subr.mxu0 0.0
    %781 = vmatpush1.msra.mxu0 0.0
    %782 = vmatprep.subr.mxu0 0.0
    %783 = vmatpush1.msra.mxu0 0.0
    %784 = vmatprep.subr.mxu0 0.0
    %785 = vmatpush1.msra.mxu0 0.0
    %786 = vmatprep.subr.mxu0 0.0
    %787 = vmatpush1.msra.mxu0 0.0
    %788 = vmatprep.subr.mxu0 0.0
    %789 = vmatpush1.msra.mxu0 0.0
    %790 = vmatprep.mubr.f32.mxu0 0.0
    %791 = vmatmul.mubr.f32.gmra.mrb[0].mxu0 %v56
    %v792 = vpop.f32.mrb[0].mxu0
    %v793 = vadd.f32 0.0, %v792
    %v794 = vpop.f32.mrb[0].mxu0
    %795 = vdwg.mxu0
    %vm796 = vcmp.ge.f32.partialorder %v793, 0.0
    %v797 = vmul.f32 %v793, 0.2
    %v798 = vsel %vm796, %v793, %v797
    %v800 = vsel %vm137, %v798, 0
    %802 = vmatprep.subr.mxu0 0.0
    %803 = vmatpush1.xpose.msra.mxu0 %v142
    %804 = vmatprep.subr.mxu0 0.0
    %805 = vmatpush1.xpose.msra.mxu0 %v145
    %806 = vmatprep.subr.mxu0 0.0
    %807 = vmatpush1.xpose.msra.mxu0 0.0
    %808 = vmatprep.subr.mxu0 0.0
    %809 = vmatpush1.xpose.msra.mxu0 0.0
    %810 = vmatprep.subr.mxu0 0.0
    %811 = vmatpush1.xpose.msra.mxu0 0.0
    %812 = vmatprep.subr.mxu0 0.0
    %813 = vmatpush1.xpose.msra.mxu0 0.0
    %814 = vmatprep.subr.mxu0 0.0
    %815 = vmatpush1.xpose.msra.mxu0 0.0
    %816 = vmatprep.subr.mxu0 0.0
    %817 = vmatpush1.xpose.msra.mxu0 0.0
    %818 = vmatprep.subr.mxu0 0.0
    %819 = vmatpush1.xpose.msra.mxu0 0.0
    %820 = vmatprep.subr.mxu0 0.0
    %821 = vmatpush1.xpose.msra.mxu0 0.0
    %822 = vmatprep.subr.mxu0 0.0
    %823 = vmatpush1.xpose.msra.mxu0 0.0
    %824 = vmatprep.subr.mxu0 0.0
    %825 = vmatpush1.xpose.msra.mxu0 0.0
    %826 = vmatprep.subr.mxu0 0.0
    %827 = vmatpush1.xpose.msra.mxu0 0.0
    %828 = vmatprep.subr.mxu0 0.0
    %829 = vmatpush1.xpose.msra.mxu0 0.0
    %830 = vmatprep.subr.mxu0 0.0
    %831 = vmatpush1.xpose.msra.mxu0 0.0
    %832 = vmatprep.subr.mxu0 0.0
    %833 = vmatpush1.xpose.msra.mxu0 0.0
    %834 = vmatprep.subr.mxu0 0.0
    %835 = vmatpush1.xpose.msra.mxu0 0.0
    %836 = vmatprep.subr.mxu0 0.0
    %837 = vmatpush1.xpose.msra.mxu0 0.0
    %838 = vmatprep.subr.mxu0 0.0
    %839 = vmatpush1.xpose.msra.mxu0 0.0
    %840 = vmatprep.subr.mxu0 0.0
    %841 = vmatpush1.xpose.msra.mxu0 0.0
    %842 = vmatprep.subr.mxu0 0.0
    %843 = vmatpush1.xpose.msra.mxu0 0.0
    %844 = vmatprep.subr.mxu0 0.0
    %845 = vmatpush1.xpose.msra.mxu0 0.0
    %846 = vmatprep.subr.mxu0 0.0
    %847 = vmatpush1.xpose.msra.mxu0 0.0
    %848 = vmatprep.subr.mxu0 0.0
    %849 = vmatpush1.xpose.msra.mxu0 0.0
    %850 = vmatprep.subr.mxu0 0.0
    %851 = vmatpush1.xpose.msra.mxu0 0.0
    %852 = vmatprep.subr.mxu0 0.0
    %853 = vmatpush1.xpose.msra.mxu0 0.0
    %854 = vmatprep.subr.mxu0 0.0
    %855 = vmatpush1.xpose.msra.mxu0 0.0
    %856 = vmatprep.subr.mxu0 0.0
    %857 = vmatpush1.xpose.msra.mxu0 0.0
    %858 = vmatprep.subr.mxu0 0.0
    %859 = vmatpush1.xpose.msra.mxu0 0.0
    %860 = vmatprep.subr.mxu0 0.0
    %861 = vmatpush1.xpose.msra.mxu0 0.0
    %862 = vmatprep.subr.mxu0 0.0
    %863 = vmatpush1.xpose.msra.mxu0 0.0
    %864 = vmatprep.subr.mxu0 0.0
    %865 = vmatpush1.xpose.msra.mxu0 0.0
    %866 = vmatprep.mubr.f32.mxu0 0.0
    %867 = vmatmul.mubr.f32.gmra.mrb[0].mxu0 %v800
    %v868 = vpop.f32.mrb[0].mxu0
    %v869 = vadd.f32 %v135, %v868
    %v870 = vpop.f32.mrb[0].mxu0
    %871 = vdwg.mxu0
    %vm872 = vcmp.ge.f32.partialorder %v869, 0.0
    %v873 = vmul.f32 %v869, 0.2
    %v874 = vsel %vm872, %v869, %v873
    %v875 = vadd.f32 %v49, %v874
    %877 = vset.pattern.permute.xlu0 0
    %878 = vperm.xlu0 %877, %v53
    %v879 = vpop.permute.xlu0 %878
    %v882 = vsel %vm137, %v875, 0
    %884 = vmatprep.subr.mxu0 0.0
    %885 = vmatpush1.xpose.msra.mxu0 %v882
    %886 = vmatprep.subr.mxu0 0.0
    %887 = vmatpush1.xpose.msra.mxu0 0.0
    %888 = vmatprep.subr.mxu0 0.0
    %889 = vmatpush1.xpose.msra.mxu0 0.0
    %890 = vmatprep.subr.mxu0 0.0
    %891 = vmatpush1.xpose.msra.mxu0 0.0
    %892 = vmatprep.subr.mxu0 0.0
    %893 = vmatpush1.xpose.msra.mxu0 0.0
    %894 = vmatprep.subr.mxu0 0.0
    %895 = vmatpush1.xpose.msra.mxu0 0.0
    %896 = vmatprep.subr.mxu0 0.0
    %897 = vmatpush1.xpose.msra.mxu0 0.0
    %898 = vmatprep.subr.mxu0 0.0
    %899 = vmatpush1.xpose.msra.mxu0 0.0
    %900 = vmatprep.subr.mxu0 0.0
    %901 = vmatpush1.xpose.msra.mxu0 0.0
    %902 = vmatprep.subr.mxu0 0.0
    %903 = vmatpush1.xpose.msra.mxu0 0.0
    %904 = vmatprep.subr.mxu0 0.0
    %905 = vmatpush1.xpose.msra.mxu0 0.0
    %906 = vmatprep.subr.mxu0 0.0
    %907 = vmatpush1.xpose.msra.mxu0 0.0
    %908 = vmatprep.subr.mxu0 0.0
    %909 = vmatpush1.xpose.msra.mxu0 0.0
    %910 = vmatprep.subr.mxu0 0.0
    %911 = vmatpush1.xpose.msra.mxu0 0.0
    %912 = vmatprep.subr.mxu0 0.0
    %913 = vmatpush1.xpose.msra.mxu0 0.0
    %914 = vmatprep.subr.mxu0 0.0
    %915 = vmatpush1.xpose.msra.mxu0 0.0
    %916 = vmatprep.subr.mxu0 0.0
    %917 = vmatpush1.xpose.msra.mxu0 0.0
    %918 = vmatprep.subr.mxu0 0.0
    %919 = vmatpush1.xpose.msra.mxu0 0.0
    %920 = vmatprep.subr.mxu0 0.0
    %921 = vmatpush1.xpose.msra.mxu0 0.0
    %922 = vmatprep.subr.mxu0 0.0
    %923 = vmatpush1.xpose.msra.mxu0 0.0
    %924 = vmatprep.subr.mxu0 0.0
    %925 = vmatpush1.xpose.msra.mxu0 0.0
    %926 = vmatprep.subr.mxu0 0.0
    %927 = vmatpush1.xpose.msra.mxu0 0.0
    %928 = vmatprep.subr.mxu0 0.0
    %929 = vmatpush1.xpose.msra.mxu0 0.0
    %930 = vmatprep.subr.mxu0 0.0
    %931 = vmatpush1.xpose.msra.mxu0 0.0
    %932 = vmatprep.subr.mxu0 0.0
    %933 = vmatpush1.xpose.msra.mxu0 0.0
    %934 = vmatprep.subr.mxu0 0.0
    %935 = vmatpush1.xpose.msra.mxu0 0.0
    %936 = vmatprep.subr.mxu0 0.0
    %937 = vmatpush1.xpose.msra.mxu0 0.0
    %938 = vmatprep.subr.mxu0 0.0
    %939 = vmatpush1.xpose.msra.mxu0 0.0
    %940 = vmatprep.subr.mxu0 0.0
    %941 = vmatpush1.xpose.msra.mxu0 0.0
    %942 = vmatprep.subr.mxu0 0.0
    %943 = vmatpush1.xpose.msra.mxu0 0.0
    %944 = vmatprep.subr.mxu0 0.0
    %945 = vmatpush1.xpose.msra.mxu0 0.0
    %946 = vmatprep.subr.mxu0 0.0
    %947 = vmatpush1.xpose.msra.mxu0 0.0
    %948 = vmatprep.mubr.f32.mxu0 0.0
    %949 = vmatmul.mubr.f32.gmra.mrb[0].mxu0 %v227
    %v950 = vpop.f32.mrb[0].mxu0
    %v951 = vadd.f32 %v879, %v950
    %v952 = vpop.f32.mrb[0].mxu0
    %953 = vdwg.mxu0
    %v954 = vxor.u32 %v951, 2147483648
    %v955 = vmul.f32 %v954, 1.442695
    %v956 = vpow.pop %v955
    %v957 = vadd.f32 %v956, 1.0
    %v958 = vrcp.pop %v957
    %v959 = vmul.f32 1.0, %v958
    %v960 = vsel %vm54, %v959, 0.0
    %961 = vadd.xlane.f32.xlu0 %v960
    %v962 = vpop.xlane.xlu0 %961
    %v963 = vrsqrt.pop %v962
    %v964 = vmul.f32 %v963, 0.25
    %v966 = vsel %vm313, %v964, 0
    %968 = vmatprep.subr.mxu0 0.0
    %969 = vmatpush1.xpose.msra.mxu0 %v966
    %970 = vmatprep.subr.mxu0 0.0
    %971 = vmatpush1.xpose.msra.mxu0 0.0
    %972 = vmatprep.subr.mxu0 0.0
    %973 = vmatpush1.xpose.msra.mxu0 0.0
    %974 = vmatprep.subr.mxu0 0.0
    %975 = vmatpush1.xpose.msra.mxu0 0.0
    %976 = vmatprep.subr.mxu0 0.0
    %977 = vmatpush1.xpose.msra.mxu0 0.0
    %978 = vmatprep.subr.mxu0 0.0
    %979 = vmatpush1.xpose.msra.mxu0 0.0
    %980 = vmatprep.subr.mxu0 0.0
    %981 = vmatpush1.xpose.msra.mxu0 0.0
    %982 = vmatprep.subr.mxu0 0.0
    %983 = vmatpush1.xpose.msra.mxu0 0.0
    %984 = vmatprep.subr.mxu0 0.0
    %985 = vmatpush1.xpose.msra.mxu0 0.0
    %986 = vmatprep.subr.mxu0 0.0
    %987 = vmatpush1.xpose.msra.mxu0 0.0
    %988 = vmatprep.subr.mxu0 0.0
    %989 = vmatpush1.xpose.msra.mxu0 0.0
    %990 = vmatprep.subr.mxu0 0.0
    %991 = vmatpush1.xpose.msra.mxu0 0.0
    %992 = vmatprep.subr.mxu0 0.0
    %993 = vmatpush1.xpose.msra.mxu0 0.0
    %994 = vmatprep.subr.mxu0 0.0
    %995 = vmatpush1.xpose.msra.mxu0 0.0
    %996 = vmatprep.subr.mxu0 0.0
    %997 = vmatpush1.xpose.msra.mxu0 0.0
    %998 = vmatprep.subr.mxu0 0.0
    %999 = vmatpush1.xpose.msra.mxu0 0.0
    %1000 = vmatprep.subr.mxu0 0.0
    %1001 = vmatpush1.xpose.msra.mxu0 0.0
    %1002 = vmatprep.subr.mxu0 0.0
    %1003 = vmatpush1.xpose.msra.mxu0 0.0
    %1004 = vmatprep.subr.mxu0 0.0
    %1005 = vmatpush1.xpose.msra.mxu0 0.0
    %1006 = vmatprep.subr.mxu0 0.0
    %1007 = vmatpush1.xpose.msra.mxu0 0.0
    %1008 = vmatprep.subr.mxu0 0.0
    %1009 = vmatpush1.xpose.msra.mxu0 0.0
    %1010 = vmatprep.subr.mxu0 0.0
    %1011 = vmatpush1.xpose.msra.mxu0 0.0
    %1012 = vmatprep.subr.mxu0 0.0
    %1013 = vmatpush1.xpose.msra.mxu0 0.0
    %1014 = vmatprep.subr.mxu0 0.0
    %1015 = vmatpush1.xpose.msra.mxu0 0.0
    %1016 = vmatprep.subr.mxu0 0.0
    %1017 = vmatpush1.xpose.msra.mxu0 0.0
    %1018 = vmatprep.subr.mxu0 0.0
    %1019 = vmatpush1.xpose.msra.mxu0 0.0
    %1020 = vmatprep.subr.mxu0 0.0
    %1021 = vmatpush1.xpose.msra.mxu0 0.0
    %1022 = vmatprep.subr.mxu0 0.0
    %1023 = vmatpush1.xpose.msra.mxu0 0.0
    %1024 = vmatprep.subr.mxu0 0.0
    %1025 = vmatpush1.xpose.msra.mxu0 0.0
    %1026 = vmatprep.subr.mxu0 0.0
    %1027 = vmatpush1.xpose.msra.mxu0 0.0
    %1028 = vmatprep.subr.mxu0 0.0
    %1029 = vmatpush1.xpose.msra.mxu0 0.0
    %1030 = vmatprep.subr.mxu0 0.0
    %1031 = vmatpush1.xpose.msra.mxu0 0.0
    %1032 = vmatprep.mubr.f32.mxu0 0.0
    %1033 = vmatmul.mubr.f32.gmra.mrb[0].mxu0 %v966
    %v1034 = vpop.f32.mrb[0].mxu0
    %v1035 = vadd.f32 0.0, %v1034
    %v1036 = vpop.f32.mrb[0].mxu0
    %1037 = vdwg.mxu0
    %v1038 = vmul.f32 %v1035, %v959
    %v1039 = vadd.f32 %v1038, %v42
    %v1040 = vrot.slane %v50, 1
    %v1041 = vsel %vm54, %v1040, 0
    %v1044 = vsel %vm54, %v1039, 0
    %1046 = vmatprep.subr.mxu0 0.0
    %1047 = vmatpush1.xpose.msra.mxu0 %v1044
    %1048 = vmatprep.subr.mxu0 0.0
    %1049 = vmatpush1.xpose.msra.mxu0 0.0
    %1050 = vmatprep.subr.mxu0 0.0
    %1051 = vmatpush1.xpose.msra.mxu0 0.0
    %1052 = vmatprep.subr.mxu0 0.0
    %1053 = vmatpush1.xpose.msra.mxu0 0.0
    %1054 = vmatprep.subr.mxu0 0.0
    %1055 = vmatpush1.xpose.msra.mxu0 0.0
    %1056 = vmatprep.subr.mxu0 0.0
    %1057 = vmatpush1.xpose.msra.mxu0 0.0
    %1058 = vmatprep.subr.mxu0 0.0
    %1059 = vmatpush1.xpose.msra.mxu0 0.0
    %1060 = vmatprep.subr.mxu0 0.0
    %1061 = vmatpush1.xpose.msra.mxu0 0.0
    %1062 = vmatprep.subr.mxu0 0.0
    %1063 = vmatpush1.xpose.msra.mxu0 0.0
    %1064 = vmatprep.subr.mxu0 0.0
    %1065 = vmatpush1.xpose.msra.mxu0 0.0
    %1066 = vmatprep.subr.mxu0 0.0
    %1067 = vmatpush1.xpose.msra.mxu0 0.0
    %1068 = vmatprep.subr.mxu0 0.0
    %1069 = vmatpush1.xpose.msra.mxu0 0.0
    %1070 = vmatprep.subr.mxu0 0.0
    %1071 = vmatpush1.xpose.msra.mxu0 0.0
    %1072 = vmatprep.subr.mxu0 0.0
    %1073 = vmatpush1.xpose.msra.mxu0 0.0
    %1074 = vmatprep.subr.mxu0 0.0
    %1075 = vmatpush1.xpose.msra.mxu0 0.0
    %1076 = vmatprep.subr.mxu0 0.0
    %1077 = vmatpush1.xpose.msra.mxu0 0.0
    %1078 = vmatprep.subr.mxu0 0.0
    %1079 = vmatpush1.xpose.msra.mxu0 0.0
    %1080 = vmatprep.subr.mxu0 0.0
    %1081 = vmatpush1.xpose.msra.mxu0 0.0
    %1082 = vmatprep.subr.mxu0 0.0
    %1083 = vmatpush1.xpose.msra.mxu0 0.0
    %1084 = vmatprep.subr.mxu0 0.0
    %1085 = vmatpush1.xpose.msra.mxu0 0.0
    %1086 = vmatprep.subr.mxu0 0.0
    %1087 = vmatpush1.xpose.msra.mxu0 0.0
    %1088 = vmatprep.subr.mxu0 0.0
    %1089 = vmatpush1.xpose.msra.mxu0 0.0
    %1090 = vmatprep.subr.mxu0 0.0
    %1091 = vmatpush1.xpose.msra.mxu0 0.0
    %1092 = vmatprep.subr.mxu0 0.0
    %1093 = vmatpush1.xpose.msra.mxu0 0.0
    %1094 = vmatprep.subr.mxu0 0.0
    %1095 = vmatpush1.xpose.msra.mxu0 0.0
    %1096 = vmatprep.subr.mxu0 0.0
    %1097 = vmatpush1.xpose.msra.mxu0 0.0
    %1098 = vmatprep.subr.mxu0 0.0
    %1099 = vmatpush1.xpose.msra.mxu0 0.0
    %1100 = vmatprep.subr.mxu0 0.0
    %1101 = vmatpush1.xpose.msra.mxu0 0.0
    %1102 = vmatprep.subr.mxu0 0.0
    %1103 = vmatpush1.xpose.msra.mxu0 0.0
    %1104 = vmatprep.subr.mxu0 0.0
    %1105 = vmatpush1.xpose.msra.mxu0 0.0
    %1106 = vmatprep.subr.mxu0 0.0
    %1107 = vmatpush1.xpose.msra.mxu0 0.0
    %1108 = vmatprep.subr.mxu0 0.0
    %1109 = vmatpush1.xpose.msra.mxu0 0.0
    %1110 = vmatprep.mubr.f32.mxu0 0.0
    %1111 = vmatmul.mubr.f32.gmra.mrb[0].mxu0 %v1041
    %v1112 = vpop.f32.mrb[0].mxu0
    %v1113 = vadd.f32 0.0, %v1112
    %v1114 = vpop.f32.mrb[0].mxu0
    %1115 = vdwg.mxu0
    %v1117 = vrot.slane %v1113, 7
    %v1119 = vsub.f32 %v50, %v1117
    %v1120 = vmul.f32 %v1119, %v1119
    %vm1121 = vcmask 58369
    %v1122 = vsel %vm1121, %v1120, 0.0
    %1123 = vadd.xlane.f32.xlu0 %v1122
    %v1124 = vpop.xlane.xlu0 %1123
    %v1125 = vrsqrt.pop %v1124
    %v1126 = vmul.f32 %v1124, %v1125
    %vm1127 = vcmp.eq.f32.partialorder %v1124, inf
    %v1128 = vsel %vm1127, %v1124, %v1126
    %vm1129 = vcmp.eq.f32.partialorder %v1124, 0.0
    %v1130 = vand.u32 %v1124, 2147483648
    %v1131 = vsel %vm1129, %v1130, %v1128
    %1132 = vmatprep.subr.mxu0 0.0
    %1133 = vmatpush1.msra.mxu0 %v875
    %1134 = vmatprep.subr.mxu0 0.0
    %1135 = vmatpush1.msra.mxu0 0.0
    %1136 = vmatprep.subr.mxu0 0.0
    %1137 = vmatpush1.msra.mxu0 0.0
    %1138 = vmatprep.subr.mxu0 0.0
    %1139 = vmatpush1.msra.mxu0 0.0
    %1140 = vmatprep.subr.mxu0 0.0
    %1141 = vmatpush1.msra.mxu0 0.0
    %1142 = vmatprep.subr.mxu0 0.0
    %1143 = vmatpush1.msra.mxu0 0.0
    %1144 = vmatprep.subr.mxu0 0.0
    %1145 = vmatpush1.msra.mxu0 0.0
    %1146 = vmatprep.subr.mxu0 0.0
    %1147 = vmatpush1.msra.mxu0 0.0
    %1148 = vmatprep.subr.mxu0 0.0
    %1149 = vmatpush1.msra.mxu0 0.0
    %1150 = vmatprep.subr.mxu0 0.0
    %1151 = vmatpush1.msra.mxu0 0.0
    %1152 = vmatprep.subr.mxu0 0.0
    %1153 = vmatpush1.msra.mxu0 0.0
    %1154 = vmatprep.subr.mxu0 0.0
    %1155 = vmatpush1.msra.mxu0 0.0
    %1156 = vmatprep.subr.mxu0 0.0
    %1157 = vmatpush1.msra.mxu0 0.0
    %1158 = vmatprep.subr.mxu0 0.0
    %1159 = vmatpush1.msra.mxu0 0.0
    %1160 = vmatprep.subr.mxu0 0.0
    %1161 = vmatpush1.msra.mxu0 0.0
    %1162 = vmatprep.subr.mxu0 0.0
    %1163 = vmatpush1.msra.mxu0 0.0
    %1164 = vmatprep.subr.mxu0 0.0
    %1165 = vmatpush1.msra.mxu0 0.0
    %1166 = vmatprep.subr.mxu0 0.0
    %1167 = vmatpush1.msra.mxu0 0.0
    %1168 = vmatprep.subr.mxu0 0.0
    %1169 = vmatpush1.msra.mxu0 0.0
    %1170 = vmatprep.subr.mxu0 0.0
    %1171 = vmatpush1.msra.mxu0 0.0
    %1172 = vmatprep.subr.mxu0 0.0
    %1173 = vmatpush1.msra.mxu0 0.0
    %1174 = vmatprep.subr.mxu0 0.0
    %1175 = vmatpush1.msra.mxu0 0.0
    %1176 = vmatprep.subr.mxu0 0.0
    %1177 = vmatpush1.msra.mxu0 0.0
    %1178 = vmatprep.subr.mxu0 0.0
    %1179 = vmatpush1.msra.mxu0 0.0
    %1180 = vmatprep.subr.mxu0 0.0
    %1181 = vmatpush1.msra.mxu0 0.0
    %1182 = vmatprep.subr.mxu0 0.0
    %1183 = vmatpush1.msra.mxu0 0.0
    %1184 = vmatprep.subr.mxu0 0.0
    %1185 = vmatpush1.msra.mxu0 0.0
    %1186 = vmatprep.subr.mxu0 0.0
    %1187 = vmatpush1.msra.mxu0 0.0
    %1188 = vmatprep.subr.mxu0 0.0
    %1189 = vmatpush1.msra.mxu0 0.0
    %1190 = vmatprep.subr.mxu0 0.0
    %1191 = vmatpush1.msra.mxu0 0.0
    %1192 = vmatprep.subr.mxu0 0.0
    %1193 = vmatpush1.msra.mxu0 0.0
    %1194 = vmatprep.subr.mxu0 0.0
    %1195 = vmatpush1.msra.mxu0 0.0
    %1196 = vmatprep.mubr.f32.mxu0 0.0
    %1197 = vmatmul.mubr.f32.gmra.mrb[0].mxu0 %v1044
    %v1198 = vpop.f32.mrb[0].mxu0
    %v1199 = vadd.f32 0.0, %v1198
    %v1200 = vpop.f32.mrb[0].mxu0
    %1201 = vdwg.mxu0
    %vm1202 = vcmp.ge.f32.partialorder %v1199, 0.0
    %v1203 = vmul.f32 %v1199, 0.2
    %v1204 = vsel %vm1202, %v1199, %v1203
    %v1206 = vsel %vm137, %v1204, 0
    %1208 = vmatprep.subr.mxu0 0.0
    %1209 = vmatpush1.xpose.msra.mxu0 %v565
    %1210 = vmatprep.subr.mxu0 0.0
    %1211 = vmatpush1.xpose.msra.mxu0 %v568
    %1212 = vmatprep.subr.mxu0 0.0
    %1213 = vmatpush1.xpose.msra.mxu0 %v571
    %1214 = vmatprep.subr.mxu0 0.0
    %1215 = vmatpush1.xpose.msra.mxu0 %v574
    %1216 = vmatprep.subr.mxu0 0.0
    %1217 = vmatpush1.xpose.msra.mxu0 0.0
    %1218 = vmatprep.subr.mxu0 0.0
    %1219 = vmatpush1.xpose.msra.mxu0 0.0
    %1220 = vmatprep.subr.mxu0 0.0
    %1221 = vmatpush1.xpose.msra.mxu0 0.0
    %1222 = vmatprep.subr.mxu0 0.0
    %1223 = vmatpush1.xpose.msra.mxu0 0.0
    %1224 = vmatprep.subr.mxu0 0.0
    %1225 = vmatpush1.xpose.msra.mxu0 0.0
    %1226 = vmatprep.subr.mxu0 0.0
    %1227 = vmatpush1.xpose.msra.mxu0 0.0
    %1228 = vmatprep.subr.mxu0 0.0
    %1229 = vmatpush1.xpose.msra.mxu0 0.0
    %1230 = vmatprep.subr.mxu0 0.0
    %1231 = vmatpush1.xpose.msra.mxu0 0.0
    %1232 = vmatprep.subr.mxu0 0.0
    %1233 = vmatpush1.xpose.msra.mxu0 0.0
    %1234 = vmatprep.subr.mxu0 0.0
    %1235 = vmatpush1.xpose.msra.mxu0 0.0
    %1236 = vmatprep.subr.mxu0 0.0
    %1237 = vmatpush1.xpose.msra.mxu0 0.0
    %1238 = vmatprep.subr.mxu0 0.0
    %1239 = vmatpush1.xpose.msra.mxu0 0.0
    %1240 = vmatprep.subr.mxu0 0.0
    %1241 = vmatpush1.xpose.msra.mxu0 0.0
    %1242 = vmatprep.subr.mxu0 0.0
    %1243 = vmatpush1.xpose.msra.mxu0 0.0
    %1244 = vmatprep.subr.mxu0 0.0
    %1245 = vmatpush1.xpose.msra.mxu0 0.0
    %1246 = vmatprep.subr.mxu0 0.0
    %1247 = vmatpush1.xpose.msra.mxu0 0.0
    %1248 = vmatprep.subr.mxu0 0.0
    %1249 = vmatpush1.xpose.msra.mxu0 0.0
    %1250 = vmatprep.subr.mxu0 0.0
    %1251 = vmatpush1.xpose.msra.mxu0 0.0
    %1252 = vmatprep.subr.mxu0 0.0
    %1253 = vmatpush1.xpose.msra.mxu0 0.0
    %1254 = vmatprep.subr.mxu0 0.0
    %1255 = vmatpush1.xpose.msra.mxu0 0.0
    %1256 = vmatprep.subr.mxu0 0.0
    %1257 = vmatpush1.xpose.msra.mxu0 0.0
    %1258 = vmatprep.subr.mxu0 0.0
    %1259 = vmatpush1.xpose.msra.mxu0 0.0
    %1260 = vmatprep.subr.mxu0 0.0
    %1261 = vmatpush1.xpose.msra.mxu0 0.0
    %1262 = vmatprep.subr.mxu0 0.0
    %1263 = vmatpush1.xpose.msra.mxu0 0.0
    %1264 = vmatprep.subr.mxu0 0.0
    %1265 = vmatpush1.xpose.msra.mxu0 0.0
    %1266 = vmatprep.subr.mxu0 0.0
    %1267 = vmatpush1.xpose.msra.mxu0 0.0
    %1268 = vmatprep.subr.mxu0 0.0
    %1269 = vmatpush1.xpose.msra.mxu0 0.0
    %1270 = vmatprep.subr.mxu0 0.0
    %1271 = vmatpush1.xpose.msra.mxu0 0.0
    %1272 = vmatprep.mubr.f32.mxu0 0.0
    %1273 = vmatmul.mubr.f32.gmra.mrb[0].mxu0 %v1206
    %v1274 = vpop.f32.mrb[0].mxu0
    %v1275 = vadd.f32 %v559, %v1274
    %v1276 = vpop.f32.mrb[0].mxu0
    %1277 = vdwg.mxu0
    %vm1278 = vcmp.ge.f32.partialorder %v1275, 0.0
    %v1279 = vmul.f32 %v1275, 0.2
    %v1280 = vsel %vm1278, %v1275, %v1279
    %v1281 = vrot.slane %v51, 1
    %v1282 = vsel %vm649, %v1281, 0
    %v1285 = vsel %vm649, %v1280, 0
    %1287 = vmatprep.subr.mxu0 0.0
    %1288 = vmatpush1.xpose.msra.mxu0 %v1285
    %1289 = vmatprep.subr.mxu0 0.0
    %1290 = vmatpush1.xpose.msra.mxu0 0.0
    %1291 = vmatprep.subr.mxu0 0.0
    %1292 = vmatpush1.xpose.msra.mxu0 0.0
    %1293 = vmatprep.subr.mxu0 0.0
    %1294 = vmatpush1.xpose.msra.mxu0 0.0
    %1295 = vmatprep.subr.mxu0 0.0
    %1296 = vmatpush1.xpose.msra.mxu0 0.0
    %1297 = vmatprep.subr.mxu0 0.0
    %1298 = vmatpush1.xpose.msra.mxu0 0.0
    %1299 = vmatprep.subr.mxu0 0.0
    %1300 = vmatpush1.xpose.msra.mxu0 0.0
    %1301 = vmatprep.subr.mxu0 0.0
    %1302 = vmatpush1.xpose.msra.mxu0 0.0
    %1303 = vmatprep.subr.mxu0 0.0
    %1304 = vmatpush1.xpose.msra.mxu0 0.0
    %1305 = vmatprep.subr.mxu0 0.0
    %1306 = vmatpush1.xpose.msra.mxu0 0.0
    %1307 = vmatprep.subr.mxu0 0.0
    %1308 = vmatpush1.xpose.msra.mxu0 0.0
    %1309 = vmatprep.subr.mxu0 0.0
    %1310 = vmatpush1.xpose.msra.mxu0 0.0
    %1311 = vmatprep.subr.mxu0 0.0
    %1312 = vmatpush1.xpose.msra.mxu0 0.0
    %1313 = vmatprep.subr.mxu0 0.0
    %1314 = vmatpush1.xpose.msra.mxu0 0.0
    %1315 = vmatprep.subr.mxu0 0.0
    %1316 = vmatpush1.xpose.msra.mxu0 0.0
    %1317 = vmatprep.subr.mxu0 0.0
    %1318 = vmatpush1.xpose.msra.mxu0 0.0
    %1319 = vmatprep.subr.mxu0 0.0
    %1320 = vmatpush1.xpose.msra.mxu0 0.0
    %1321 = vmatprep.subr.mxu0 0.0
    %1322 = vmatpush1.xpose.msra.mxu0 0.0
    %1323 = vmatprep.subr.mxu0 0.0
    %1324 = vmatpush1.xpose.msra.mxu0 0.0
    %1325 = vmatprep.subr.mxu0 0.0
    %1326 = vmatpush1.xpose.msra.mxu0 0.0
    %1327 = vmatprep.subr.mxu0 0.0
    %1328 = vmatpush1.xpose.msra.mxu0 0.0
    %1329 = vmatprep.subr.mxu0 0.0
    %1330 = vmatpush1.xpose.msra.mxu0 0.0
    %1331 = vmatprep.subr.mxu0 0.0
    %1332 = vmatpush1.xpose.msra.mxu0 0.0
    %1333 = vmatprep.subr.mxu0 0.0
    %1334 = vmatpush1.xpose.msra.mxu0 0.0
    %1335 = vmatprep.subr.mxu0 0.0
    %1336 = vmatpush1.xpose.msra.mxu0 0.0
    %1337 = vmatprep.subr.mxu0 0.0
    %1338 = vmatpush1.xpose.msra.mxu0 0.0
    %1339 = vmatprep.subr.mxu0 0.0
    %1340 = vmatpush1.xpose.msra.mxu0 0.0
    %1341 = vmatprep.subr.mxu0 0.0
    %1342 = vmatpush1.xpose.msra.mxu0 0.0
    %1343 = vmatprep.subr.mxu0 0.0
    %1344 = vmatpush1.xpose.msra.mxu0 0.0
    %1345 = vmatprep.subr.mxu0 0.0
    %1346 = vmatpush1.xpose.msra.mxu0 0.0
    %1347 = vmatprep.subr.mxu0 0.0
    %1348 = vmatpush1.xpose.msra.mxu0 0.0
    %1349 = vmatprep.subr.mxu0 0.0
    %1350 = vmatpush1.xpose.msra.mxu0 0.0
    %1351 = vmatprep.mubr.f32.mxu0 0.0
    %1352 = vmatmul.mubr.f32.gmra.mrb[0].mxu0 %v1282
    %v1353 = vpop.f32.mrb[0].mxu0
    %v1354 = vadd.f32 0.0, %v1353
    %v1355 = vpop.f32.mrb[0].mxu0
    %1356 = vdwg.mxu0
    %v1358 = vrot.slane %v1354, 7
    %vm1360 = vcmask 1040384
    %v1361 = vsel %vm1360, %v723, %v1358
    %vm1362 = vcmask 58368
    %1363 = vst.msk [vmem:[#allocation2] sm:$0x3] %vm1362, %v1361
    %v1364 = vsel %vm1360, %v477, %v1131
    %vm1365 = vcmask 1024
    %1366 = vst.msk [vmem:[%s12] sm:$0x3] %vm1365, %v1364
    // Predicated region
    $region46: #{tpu_custom_call.1} parent=1 // pred_check
      _
    $region47: #{tpu_custom_call.1} parent=1 // pred_check_branch
      %1368 = sbr.rel (0) target = $region49
    $region48: #{tpu_custom_call.1} parent=1 // pred_region
      %s1370 = ssub.s32 32, 32
      %1371 = vsyncadd [#allocation3], %s1370
      %s1373 = sshll.u32 [#allocation2], 4
      %s1374 = int_to_ptr.vmem [resolvable:$true] %s1373
      %1376 = dma.vmem_to_hbm [thread:$0]  %s1374, 32, %s11, [#allocation3]
    $region49: #{tpu_custom_call.1} parent=1 // pred_fallthru
      _
    // Predicated region
    $region50: #{tpu_custom_call.1} parent=1 // pred_check
      _
    $region51: #{tpu_custom_call.1} parent=1 // pred_check_branch
      %1378 = sbr.rel (0) target = $region53
    $region52: #{tpu_custom_call.1} parent=1 // pred_region
      _
    $region53: #{tpu_custom_call.1} parent=1 // pred_fallthru
      _
    // Predicated region
    $region54: #{tpu_custom_call.1} parent=1 // pred_check
      _
    $region55: #{tpu_custom_call.1} parent=1 // pred_check_branch
      %1380 = sbr.rel (0) target = $region57
    $region56: #{tpu_custom_call.1} parent=1 // pred_region
      %1381 = dma.done [#allocation3], 32
    $region57: #{tpu_custom_call.1} parent=1 // pred_fallthru
      _
    // Predicated region
    $region58: #{tpu_custom_call.1} parent=1 // pred_check
      _
    $region59: #{tpu_custom_call.1} parent=1 // pred_check_branch
      %1383 = sbr.rel (0) target = $region61
    $region60: #{tpu_custom_call.1} parent=1 // pred_region
      _
    $region61: #{tpu_custom_call.1} parent=1 // pred_fallthru
      _
    %1384 = vsyncpa [#allocation3], 1

</llo_original>
